<compile_context>
chip_gen: v7x
topology: tpu7x:2x2x1
jax: 0.10.0
libtpu: 0.0.40
codegen_flags: <defaults>
</compile_context>

<pallas_src>
import functools
import math

import jax
import jax.numpy as jnp
import numpy as np
from jax.experimental import pallas as pl
from jax.experimental.pallas import tpu as pltpu

EPS = 1e-8  # asteroid gLN epsilon


@functools.lru_cache(maxsize=1)
def _vmem_limit_bytes():
    # Per-generation VMEM budget with headroom for compiler scratch/spill
    # (~52 MiB on v7x (64 MiB physical), ~104 MiB on v5e/v6e (128 MiB)).
    try:
        cap = getattr(pltpu.get_tpu_info(), "vmem_capacity_bytes", None)
        if cap:
            return int(cap) * 13 // 16
    except Exception:
        pass
    return 64 * 1024 * 1024


# ----------------------------------------------------------------------------
# Pallas kernel: one full repeat (n_blocks fused SepConv1DBlocks + 1x1 masks)
# ----------------------------------------------------------------------------
def repeat_kernel(*refs, kernel_size, dilations, seq_len, first_repeat):
    n_blocks = len(dilations)
    n_stacked = n_blocks - 1 if first_repeat else n_blocks

    it = iter(refs)
    x_ref = next(it)                         # [1, c_in0, T128]  (tail zeroed)
    film_ref = next(it)                      # [1, n_blocks, c_hid, 2]
    chan_ref = next(it)                      # [n_blocks, c_hid, 3]
    linw_ref = next(it)                      # [n_blocks, n_src_pad, c_hid+1]
    w0_ref = next(it) if first_repeat else None        # [c_hid, K] f32
    wstack_ref = next(it) if n_stacked > 0 else None   # [n_stacked, c_hid, K*c_hid] bf16
    act_out_ref = next(it)                   # [1, c_hid, T128]
    mask_ref = next(it)                      # [1, n_blocks, n_src_pad, T128]

    c_hid, t128 = act_out_ref.shape[1], act_out_ref.shape[2]

    # One lane-index row reused for every halo / tail mask (feedback #8).
    lane = jax.lax.broadcasted_iota(jnp.int32, (1, t128), 1)
    valid_f = (lane < seq_len).astype(jnp.float32)        # (1, T128)

    def shifted(src, s):
        # src tail is zero; positive s shifts toward higher time indices.
        if s == 0:
            return src
        rolled = pltpu.roll(src, s % t128, axis=1)
        lo, hi = max(s, 0), t128 + min(s, 0)
        keep = ((lane >= lo) & (lane < hi)).astype(jnp.float32)
        return rolled * keep                               # (c, T128)

    act = None
    for xb in range(n_blocks):
        dil = dilations[xb]
        pad = (kernel_size - 1) * dil // 2
        src = x_ref[0] if xb == 0 else act                 # conv input == residual source
        first_layer = first_repeat and xb == 0

        # ---- dilated conv: per-tap accumulation, bf16 MXU operands ----------
        if first_layer:
            # c_in == 1: contraction depth K is MXU-hostile -> VPU broadcasts.
            w0 = w0_ref[...]                               # [c_hid, K] f32
            conv = None
            for k in range(kernel_size):
                tap = shifted(src, pad - k * dil)          # (1, T128)
                term = w0[:, k:k + 1] * tap
                conv = term if conv is None else conv + term
        else:
            li = xb - 1 if first_repeat else xb
            w = wstack_ref[li]                             # [c_hid, K*c_hid] bf16
            c_in = src.shape[0]
            conv = None
            for k in range(kernel_size):
                tap = shifted(src, pad - k * dil).astype(jnp.bfloat16)
                part = jnp.dot(w[:, k * c_in:(k + 1) * c_in], tap,
                               preferred_element_type=jnp.float32)
                conv = part if conv is None else conv + part

        # ---- FiLM conditioning (conv bias folded into the shift) ------------
        film = film_ref[0, xb]                             # [c_hid, 2]
        cond = film[:, 0:1] * conv + film[:, 1:2]

        # ---- PReLU -----------------------------------------------------------
        ch = chan_ref[xb]                                  # [c_hid, 3] gamma|beta|alpha
        alpha = ch[0:1, 2:3]
        y = jnp.where(cond >= 0, cond, alpha * cond)

        # ---- gLN over (channels, valid time): two-pass, f32, EUP rsqrt ------
        inv_n = 1.0 / float(c_hid * seq_len)
        mean = jnp.sum(y * valid_f) * inv_n
        cen = (y - mean) * valid_f
        var = jnp.sum(cen * cen) * inv_n
        inv_std = jax.lax.rsqrt(var + EPS)
        z = ch[:, 0:1] * ((y - mean) * inv_std) + ch[:, 1:2]

        # ---- residual (no duplicate input read); keep padded tail zero ------
        res = z if first_layer else src + z
        act = res * valid_f

        # ---- 1x1 conv to n_src mask channels (rows padded to full sublane) --
        lw = linw_ref[xb]                                  # [n_src_pad, c_hid+1] f32
        m = jnp.dot(lw[:, :c_hid].astype(jnp.bfloat16), act.astype(jnp.bfloat16),
                    preferred_element_type=jnp.float32)
        mask_ref[0, xb] = (m + lw[:, c_hid:c_hid + 1]).astype(mask_ref.dtype)

    act_out_ref[0] = act.astype(act_out_ref.dtype)


def run_repeat(act_in, film, rep, *, seq_len, n_src_pad, embed_dim):
    B, c_in0, t128 = act_in.shape
    c_hid = embed_dim
    nb = len(rep["dilations"])
    K = rep["kernel_size"]
    first = rep["first"]

    # Roll-based halo must never wrap around the padded time axis.
    max_pad = (K - 1) * max(rep["dilations"]) // 2
    assert max_pad < t128, "dilated halo exceeds padded sequence length"

    kernel = functools.partial(repeat_kernel, kernel_size=K,
                               dilations=tuple(rep["dilations"]),
                               seq_len=seq_len, first_repeat=first)

    b3 = lambda b: (b, 0, 0)
    b4 = lambda b: (b, 0, 0, 0)
    full2 = lambda b: (0, 0)
    full3 = lambda b: (0, 0, 0)

    in_specs = [
        pl.BlockSpec((1, c_in0, t128), b3),                 # activation / mixture
        pl.BlockSpec((1, nb, c_hid, 2), b4),                # FiLM mul | eff-add
        pl.BlockSpec((nb, c_hid, 3), full3),                # gamma | beta | alpha
        pl.BlockSpec((nb, n_src_pad, c_hid + 1), full3),    # 1x1 w | b (row-padded)
    ]
    inputs = [act_in, film, rep["chan"], rep["linw"]]
    if first:
        in_specs.append(pl.BlockSpec((c_hid, K), full2))    # layer-0 conv w (c_in=1)
        inputs.append(rep["w0"])
    if rep["wstack"] is not None:
        nh = rep["wstack"].shape[0]
        in_specs.append(pl.BlockSpec((nh, c_hid, K * c_hid), full3))  # bf16 conv weights
        inputs.append(rep["wstack"])

    out_specs = [
        pl.BlockSpec((1, c_hid, t128), b3),
        pl.BlockSpec((1, nb, n_src_pad, t128), b4),
    ]
    out_shape = [
        jax.ShapeDtypeStruct((B, c_hid, t128), jnp.float32),
        jax.ShapeDtypeStruct((B, nb, n_src_pad, t128), jnp.float32),
    ]

    act_out, masks = pl.pallas_call(
        kernel,
        out_shape=out_shape,
        grid_spec=pltpu.PrefetchScalarGridSpec(
            num_scalar_prefetch=0,
            grid=(B,),
            in_specs=in_specs,
            out_specs=out_specs,
        ),
        compiler_params=pltpu.CompilerParams(
            dimension_semantics=("parallel",),
            vmem_limit_bytes=_vmem_limit_bytes()),
    )(*inputs)
    return act_out, masks


# ----------------------------------------------------------------------------
# Parameter init (deterministic, kaiming-uniform-style like the PyTorch module)
# ----------------------------------------------------------------------------
def _kaiming_uniform(key, shape, fan_in):
    bound = math.sqrt(6.0 / fan_in)
    return jax.random.uniform(key, shape, jnp.float32, -bound, bound)


def init_layer_params(key, in_chan, hid, spk_chan, K, n_src):
    ks = jax.random.split(key, 8)
    bconv_bound = 1.0 / math.sqrt(in_chan * K)
    lin_bound = 1.0 / math.sqrt(spk_chan)
    out_bound = 1.0 / math.sqrt(hid)
    p = dict(
        wconv=_kaiming_uniform(ks[0], (K, hid, in_chan), in_chan * K),
        bconv=jax.random.uniform(ks[1], (hid, 1), jnp.float32,
                                 -bconv_bound, bconv_bound),
        wmul=_kaiming_uniform(ks[2], (hid, spk_chan), spk_chan),
        bmul=jax.random.uniform(ks[3], (hid, 1), jnp.float32,
                                -lin_bound, lin_bound),
        wadd=_kaiming_uniform(ks[4], (hid, spk_chan), spk_chan),
        badd=jax.random.uniform(ks[5], (hid, 1), jnp.float32,
                                -lin_bound, lin_bound),
        alpha=jnp.full((1, 1), 0.25, jnp.float32),        # PReLU default
        gamma=jnp.ones((hid, 1), jnp.float32),            # gLN gain
        beta=jnp.zeros((hid, 1), jnp.float32),            # gLN bias
        linw=_kaiming_uniform(ks[6], (n_src, hid), hid),
        linb=jax.random.uniform(ks[7], (n_src, 1), jnp.float32,
                                -out_bound, out_bound),
    )
    # Packed layouts consumed by the kernel.
    p["wconv_flat"] = jnp.transpose(p["wconv"], (1, 0, 2)).reshape(hid, K * in_chan)
    p["chan"] = jnp.concatenate(
        [p["gamma"], p["beta"], jnp.broadcast_to(p["alpha"], (hid, 1))], axis=1)
    p["linw_ext"] = jnp.concatenate([p["linw"], p["linb"]], axis=1)
    return p


def build_stack(key, embed_dim, spk_vec_dim, n_src, n_blocks, n_repeats, K):
    layers = []
    for r in range(n_repeats):
        for x in range(n_blocks):
            key, sub = jax.random.split(key)
            in_chan = 1 if (r == 0 and x == 0) else embed_dim
            layers.append(dict(
                in_chan=in_chan,
                dilation=2 ** x,
                kernel_size=K,
                params=init_layer_params(sub, in_chan, embed_dim,
                                         spk_vec_dim * n_src, K, n_src),
            ))
    return layers


def pack_stack(layers, n_blocks, n_repeats, n_src):
    """Pre-pack per-repeat stacked parameters (conv weights cast to bf16 once)."""
    n_src_pad = ((n_src + 7) // 8) * 8
    reps = []
    for r in range(n_repeats):
        chunk = layers[r * n_blocks:(r + 1) * n_blocks]
        first = (r == 0)
        chan = jnp.stack([l["params"]["chan"] for l in chunk])
        linw = jnp.stack([jnp.pad(l["params"]["linw_ext"],
                                  ((0, n_src_pad - n_src), (0, 0)))
                          for l in chunk])
        if first:
            w0 = chunk[0]["params"]["wconv_flat"]            # [hid, K] f32 (c_in=1)
            rest = chunk[1:]
        else:
            w0 = None
            rest = chunk
        wstack = (jnp.stack([l["params"]["wconv_flat"] for l in rest])
                  .astype(jnp.bfloat16) if rest else None)
        reps.append(dict(
            first=first,
            dilations=tuple(l["dilation"] for l in chunk),
            kernel_size=chunk[0]["kernel_size"],
            chan=chan, linw=linw, w0=w0, wstack=wstack,
            film_params=[(l["params"]["wmul"], l["params"]["bmul"],
                          l["params"]["wadd"], l["params"]["badd"],
                          l["params"]["bconv"]) for l in chunk]))
    return reps, n_src_pad


# ----------------------------------------------------------------------------
# Full SeparationStack forward (return_all_layers=True)
# ----------------------------------------------------------------------------
def separation_stack_forward(mixture_w, spk_vectors, reps, n_src_pad, n_src, embed_dim):
    B, _, T = mixture_w.shape
    t128 = pl.cdiv(T, 128) * 128
    # Lane-align the time axis once; all repeats stay 128-dense after this.
    act = jnp.pad(mixture_w.astype(jnp.float32), ((0, 0), (0, 0), (0, t128 - T)))
    spk = spk_vectors.astype(jnp.float32)

    all_masks = []
    for rep in reps:
        # FiLM scale/shift per batch per layer (conv bias folded into the shift);
        # these [S]->[C_hid] projections stay off the kernel's MXU.
        films = []
        for (wmul, bmul, wadd, badd, bconv) in rep["film_params"]:
            mul = spk @ wmul.T + bmul[:, 0][None]             # [B, C_hid]
            add = spk @ wadd.T + badd[:, 0][None]             # [B, C_hid]
            add_eff = mul * bconv[:, 0][None] + add
            films.append(jnp.stack([mul, add_eff], axis=-1))  # [B, C_hid, 2]
        film = jnp.stack(films, axis=1)                       # [B, nb, C_hid, 2]

        act, masks = run_repeat(act, film, rep, seq_len=T,
                                n_src_pad=n_src_pad, embed_dim=embed_dim)
        all_masks.append(masks)

    # Strip the lane/row padding once at the very end (kept lane-dense above).
    outputs = []
    for masks in all_masks:
        for xb in range(masks.shape[1]):
            outputs.append(masks[:, xb, :n_src, :T])
    return outputs


# ----------------------------------------------------------------------------
# Pure-JAX reference (for a sanity check)
# ----------------------------------------------------------------------------
def ref_forward(mixture_w, spk_vectors, layers, embed_dim):
    B, _, T = mixture_w.shape
    output = mixture_w
    outputs = []
    for i, layer in enumerate(layers):
        p, K, d = layer["params"], layer["kernel_size"], layer["dilation"]
        pad = (K - 1) * d // 2
        x_pad = jnp.pad(output, ((0, 0), (0, 0), (pad, pad)))
        conv = jnp.zeros((B, p["wconv"].shape[1], T), jnp.float32)
        for k in range(K):
            xk = x_pad[:, :, k * d: k * d + T]
            conv = conv + jnp.einsum("hc,bct->bht", p["wconv"][k], xk)
        conv = conv + p["bconv"][None]
        mul = jnp.einsum("hs,bs->bh", p["wmul"], spk_vectors)[:, :, None] + p["bmul"][None]
        add = jnp.einsum("hs,bs->bh", p["wadd"], spk_vectors)[:, :, None] + p["badd"][None]
        cond = mul * conv + add
        y = jnp.where(cond >= 0, cond, p["alpha"][0, 0] * cond)
        mean = jnp.mean(y, axis=(1, 2), keepdims=True)
        var = jnp.mean((y - mean) ** 2, axis=(1, 2), keepdims=True)
        z = p["gamma"][None] * (y - mean) / jnp.sqrt(var + EPS) + p["beta"][None]
        prev = jnp.zeros((B, embed_dim, T), jnp.float32) if i == 0 else output
        output = prev + z
        mask = jnp.einsum("sh,bht->bst", p["linw"], output) + p["linb"][None]
        outputs.append(mask)
    return outputs


# ----------------------------------------------------------------------------
if __name__ == "__main__":
    # Small config consistent with the module's forward semantics.
    B, T = 2, 16
    embed_dim = 32
    spk_vec_dim = 16
    n_src = 2
    n_blocks = 2
    n_repeats = 2
    K = 3

    root = jax.random.PRNGKey(0)
    k_mix, k_spk, k_par = jax.random.split(root, 3)

    mixture_w = jax.random.normal(k_mix, (B, 1, T), jnp.float32)   # [batch, n_filters=1, n_frames]
    spk_vectors = jax.random.normal(k_spk, (B, spk_vec_dim * n_src), jnp.float32)

    layers = build_stack(k_par, embed_dim, spk_vec_dim, n_src, n_blocks, n_repeats, K)
    reps, n_src_pad = pack_stack(layers, n_blocks, n_repeats, n_src)

    outs = separation_stack_forward(mixture_w, spk_vectors, reps, n_src_pad, n_src, embed_dim)
    outs = [jax.block_until_ready(o) for o in outs]

    refs = ref_forward(mixture_w, spk_vectors, layers, embed_dim)
    # Tolerance loosened slightly vs the pure-f32 rev 2 because the conv and 1x1
    # mask matmuls now feed the MXU bf16 operands (f32 accumulation).
    for o, r in zip(outs, refs):
        np.testing.assert_allclose(np.asarray(o), np.asarray(r), rtol=5e-2, atol=5e-2)

    print("KERNEL_OK")
</pallas_src>

<mosaic_0001>
module attributes {stable_mosaic.version = 11 : i64} {
  func.func @repeat_kernel(%arg0: i32, %arg1: memref<1x1x128xf32, #tpu.memory_space<vmem>>, %arg2: memref<1x2x32x2xf32, #tpu.memory_space<vmem>>, %arg3: memref<2x32x3xf32, #tpu.memory_space<vmem>>, %arg4: memref<2x8x33xf32, #tpu.memory_space<vmem>>, %arg5: memref<32x3xf32, #tpu.memory_space<vmem>>, %arg6: memref<1x32x96xbf16, #tpu.memory_space<vmem>>, %arg7: memref<1x32x128xf32, #tpu.memory_space<vmem>>, %arg8: memref<1x2x8x128xf32, #tpu.memory_space<vmem>>) attributes {dimension_semantics = [#tpu.dimension_semantics<parallel>], iteration_bounds = array<i64: 2>, scalar_prefetch = 0 : i64, scratch_operands = 0 : i64, tpu.core_type = #tpu.core_type<tc>, window_params = [{transform_indices = @transform_0, window_bounds = array<i64: 1, 1, 128>}, {transform_indices = @transform_1, window_bounds = array<i64: 1, 2, 32, 2>}, {pipeline_mode = #tpu.pipeline_mode<synchronous>, transform_indices = @transform_2, window_bounds = array<i64: 2, 32, 3>}, {pipeline_mode = #tpu.pipeline_mode<synchronous>, transform_indices = @transform_3, window_bounds = array<i64: 2, 8, 33>}, {pipeline_mode = #tpu.pipeline_mode<synchronous>, transform_indices = @transform_4, window_bounds = array<i64: 32, 3>}, {pipeline_mode = #tpu.pipeline_mode<synchronous>, transform_indices = @transform_5, window_bounds = array<i64: 1, 32, 96>}, {transform_indices = @transform_6, window_bounds = array<i64: 1, 32, 128>}, {transform_indices = @transform_7, window_bounds = array<i64: 1, 2, 8, 128>}]} {
    %0 = tpu.iota {dimensions = array<i32: 1>} : vector<1x128xi32>
    %c16_i32 = arith.constant 16 : i32
    %1 = vector.broadcast %c16_i32 : i32 to vector<1x128xi32>
    %2 = arith.cmpi slt, %0, %1 : vector<1x128xi32>
    %3 = arith.extui %2 : vector<1x128xi1> to vector<1x128xi32>
    %4 = arith.sitofp %3 : vector<1x128xi32> to vector<1x128xf32>
    %c0 = arith.constant 0 : index
    %c0_0 = arith.constant 0 : index
    %c0_1 = arith.constant 0 : index
    %5 = vector.load %arg1[%c0, %c0_0, %c0_1] : memref<1x1x128xf32, #tpu.memory_space<vmem>>, vector<1x1x128xf32>
    %6 = vector.shape_cast %5 : vector<1x1x128xf32> to vector<1x128xf32>
    %c0_2 = arith.constant 0 : index
    %c0_3 = arith.constant 0 : index
    %7 = vector.load %arg5[%c0_2, %c0_3] : memref<32x3xf32, #tpu.memory_space<vmem>>, vector<32x3xf32>
    %c1_i32 = arith.constant 1 : i32
    %8 = tpu.dynamic_rotate %6 by %c1_i32 dim 1 : vector<1x128xf32>, i32 -> vector<1x128xf32>
    %c1_i32_4 = arith.constant 1 : i32
    %9 = vector.broadcast %c1_i32_4 : i32 to vector<1x128xi32>
    %10 = arith.cmpi sge, %0, %9 : vector<1x128xi32>
    %c128_i32 = arith.constant 128 : i32
    %11 = vector.broadcast %c128_i32 : i32 to vector<1x128xi32>
    %12 = arith.cmpi slt, %0, %11 : vector<1x128xi32>
    %13 = arith.andi %10, %12 : vector<1x128xi1>
    %14 = arith.extui %13 : vector<1x128xi1> to vector<1x128xi32>
    %15 = arith.sitofp %14 : vector<1x128xi32> to vector<1x128xf32>
    %16 = arith.mulf %8, %15 : vector<1x128xf32>
    %17 = vector.extract_strided_slice %7 {offsets = [0, 0], sizes = [32, 1], strides = [1, 1]} : vector<32x3xf32> to vector<32x1xf32>
    %18 = vector.broadcast %17 : vector<32x1xf32> to vector<32x128xf32>
    %19 = vector.broadcast %16 : vector<1x128xf32> to vector<32x128xf32>
    %20 = arith.mulf %18, %19 : vector<32x128xf32>
    %21 = vector.extract_strided_slice %7 {offsets = [0, 1], sizes = [32, 1], strides = [1, 1]} : vector<32x3xf32> to vector<32x1xf32>
    %22 = vector.broadcast %21 : vector<32x1xf32> to vector<32x128xf32>
    %23 = vector.broadcast %6 : vector<1x128xf32> to vector<32x128xf32>
    %24 = arith.mulf %22, %23 : vector<32x128xf32>
    %25 = arith.addf %20, %24 : vector<32x128xf32>
    %c127_i32 = arith.constant 127 : i32
    %26 = tpu.dynamic_rotate %6 by %c127_i32 dim 1 : vector<1x128xf32>, i32 -> vector<1x128xf32>
    %c0_i32 = arith.constant 0 : i32
    %27 = vector.broadcast %c0_i32 : i32 to vector<1x128xi32>
    %28 = arith.cmpi sge, %0, %27 : vector<1x128xi32>
    %c127_i32_5 = arith.constant 127 : i32
    %29 = vector.broadcast %c127_i32_5 : i32 to vector<1x128xi32>
    %30 = arith.cmpi slt, %0, %29 : vector<1x128xi32>
    %31 = arith.andi %28, %30 : vector<1x128xi1>
    %32 = arith.extui %31 : vector<1x128xi1> to vector<1x128xi32>
    %33 = arith.sitofp %32 : vector<1x128xi32> to vector<1x128xf32>
    %34 = arith.mulf %26, %33 : vector<1x128xf32>
    %35 = vector.extract_strided_slice %7 {offsets = [0, 2], sizes = [32, 1], strides = [1, 1]} : vector<32x3xf32> to vector<32x1xf32>
    %36 = vector.broadcast %35 : vector<32x1xf32> to vector<32x128xf32>
    %37 = vector.broadcast %34 : vector<1x128xf32> to vector<32x128xf32>
    %38 = arith.mulf %36, %37 : vector<32x128xf32>
    %39 = arith.addf %25, %38 : vector<32x128xf32>
    %c0_6 = arith.constant 0 : index
    %c0_7 = arith.constant 0 : index
    %c0_8 = arith.constant 0 : index
    %c0_9 = arith.constant 0 : index
    %40 = vector.load %arg2[%c0_6, %c0_7, %c0_8, %c0_9] : memref<1x2x32x2xf32, #tpu.memory_space<vmem>>, vector<1x1x32x2xf32>
    %41 = vector.shape_cast %40 : vector<1x1x32x2xf32> to vector<32x2xf32>
    %42 = vector.extract_strided_slice %41 {offsets = [0, 0], sizes = [32, 1], strides = [1, 1]} : vector<32x2xf32> to vector<32x1xf32>
    %43 = vector.broadcast %42 : vector<32x1xf32> to vector<32x128xf32>
    %44 = arith.mulf %43, %39 : vector<32x128xf32>
    %45 = vector.extract_strided_slice %41 {offsets = [0, 1], sizes = [32, 1], strides = [1, 1]} : vector<32x2xf32> to vector<32x1xf32>
    %46 = vector.broadcast %45 : vector<32x1xf32> to vector<32x128xf32>
    %47 = arith.addf %44, %46 : vector<32x128xf32>
    %c0_10 = arith.constant 0 : index
    %c0_11 = arith.constant 0 : index
    %c0_12 = arith.constant 0 : index
    %48 = vector.load %arg3[%c0_10, %c0_11, %c0_12] : memref<2x32x3xf32, #tpu.memory_space<vmem>>, vector<1x32x3xf32>
    %49 = vector.shape_cast %48 : vector<1x32x3xf32> to vector<32x3xf32>
    %50 = vector.extract_strided_slice %49 {offsets = [0, 2], sizes = [1, 1], strides = [1, 1]} : vector<32x3xf32> to vector<1x1xf32>
    %cst = arith.constant 0.000000e+00 : f32
    %51 = vector.broadcast %cst : f32 to vector<32x128xf32>
    %52 = arith.cmpf oge, %47, %51 : vector<32x128xf32>
    %53 = vector.broadcast %50 : vector<1x1xf32> to vector<32x128xf32>
    %54 = arith.mulf %53, %47 : vector<32x128xf32>
    %55 = arith.select %52, %47, %54 : vector<32x128xi1>, vector<32x128xf32>
    %56 = vector.broadcast %4 : vector<1x128xf32> to vector<32x128xf32>
    %57 = arith.mulf %55, %56 : vector<32x128xf32>
    %58 = vector.shape_cast %57 : vector<32x128xf32> to vector<1x32x128xf32>
    %cst_13 = arith.constant dense<0.000000e+00> : vector<1xf32>
    %59 = vector.multi_reduction <add>, %58, %cst_13 [1, 2] : vector<1x32x128xf32> to vector<1xf32>
    %60 = vector.shape_cast %59 : vector<1xf32> to vector<1x1x1xf32>
    %61 = vector.extract %60[0, 0, 0] : f32 from vector<1x1x1xf32>
    %cst_14 = arith.constant 0.001953125 : f32
    %62 = arith.mulf %61, %cst_14 : f32
    %63 = vector.broadcast %62 : f32 to vector<32x128xf32>
    %64 = arith.subf %55, %63 : vector<32x128xf32>
    %65 = vector.broadcast %4 : vector<1x128xf32> to vector<32x128xf32>
    %66 = arith.mulf %64, %65 : vector<32x128xf32>
    %67 = arith.mulf %66, %66 : vector<32x128xf32>
    %68 = vector.shape_cast %67 : vector<32x128xf32> to vector<1x32x128xf32>
    %cst_15 = arith.constant dense<0.000000e+00> : vector<1xf32>
    %69 = vector.multi_reduction <add>, %68, %cst_15 [1, 2] : vector<1x32x128xf32> to vector<1xf32>
    %70 = vector.shape_cast %69 : vector<1xf32> to vector<1x1x1xf32>
    %71 = vector.extract %70[0, 0, 0] : f32 from vector<1x1x1xf32>
    %cst_16 = arith.constant 0.001953125 : f32
    %72 = arith.mulf %71, %cst_16 : f32
    %cst_17 = arith.constant 9.99999993E-9 : f32
    %73 = arith.addf %72, %cst_17 : f32
    %74 = math.rsqrt %73 : f32
    %75 = vector.extract_strided_slice %49 {offsets = [0, 0], sizes = [32, 1], strides = [1, 1]} : vector<32x3xf32> to vector<32x1xf32>
    %76 = vector.broadcast %62 : f32 to vector<32x128xf32>
    %77 = arith.subf %55, %76 : vector<32x128xf32>
    %78 = vector.broadcast %74 : f32 to vector<32x128xf32>
    %79 = arith.mulf %77, %78 : vector<32x128xf32>
    %80 = vector.broadcast %75 : vector<32x1xf32> to vector<32x128xf32>
    %81 = arith.mulf %80, %79 : vector<32x128xf32>
    %82 = vector.extract_strided_slice %49 {offsets = [0, 1], sizes = [32, 1], strides = [1, 1]} : vector<32x3xf32> to vector<32x1xf32>
    %83 = vector.broadcast %82 : vector<32x1xf32> to vector<32x128xf32>
    %84 = arith.addf %81, %83 : vector<32x128xf32>
    %85 = vector.broadcast %4 : vector<1x128xf32> to vector<32x128xf32>
    %86 = arith.mulf %84, %85 : vector<32x128xf32>
    %c0_18 = arith.constant 0 : index
    %c0_19 = arith.constant 0 : index
    %c0_20 = arith.constant 0 : index
    %87 = vector.load %arg4[%c0_18, %c0_19, %c0_20] : memref<2x8x33xf32, #tpu.memory_space<vmem>>, vector<1x8x33xf32>
    %88 = vector.shape_cast %87 : vector<1x8x33xf32> to vector<8x33xf32>
    %89 = vector.extract_strided_slice %88 {offsets = [0, 0], sizes = [8, 32], strides = [1, 1]} : vector<8x33xf32> to vector<8x32xf32>
    %90 = arith.truncf %89 : vector<8x32xf32> to vector<8x32xbf16>
    %91 = arith.truncf %86 : vector<32x128xf32> to vector<32x128xbf16>
    %cst_21 = arith.constant dense<0.000000e+00> : vector<8x128xf32>
    %92 = tpu.matmul %90, %91, %cst_21 {dimension_numbers = #tpu.dot_dimension_numbers<[1], [0], [0], [1], [0, 0, 1, 1], [], []>} : vector<8x32xbf16>, vector<32x128xbf16>, vector<8x128xf32> -> vector<8x128xf32>
    %93 = vector.extract_strided_slice %88 {offsets = [0, 32], sizes = [8, 1], strides = [1, 1]} : vector<8x33xf32> to vector<8x1xf32>
    %94 = vector.broadcast %93 : vector<8x1xf32> to vector<8x128xf32>
    %95 = arith.addf %92, %94 : vector<8x128xf32>
    %c0_22 = arith.constant 0 : index
    %c0_23 = arith.constant 0 : index
    %c0_24 = arith.constant 0 : index
    %c0_25 = arith.constant 0 : index
    %96 = vector.load %arg8[%c0_22, %c0_23, %c0_24, %c0_25] : memref<1x2x8x128xf32, #tpu.memory_space<vmem>>, vector<1x1x8x128xf32>
    %97 = vector.shape_cast %96 : vector<1x1x8x128xf32> to vector<8x128xf32>
    %98 = vector.shape_cast %95 : vector<8x128xf32> to vector<1x1x8x128xf32>
    tpu.vector_store %arg8[%c0_22, %c0_23, %c0_24, %c0_25], %98 {strides = array<i32>} : memref<1x2x8x128xf32, #tpu.memory_space<vmem>>, vector<1x1x8x128xf32>,
    %c0_26 = arith.constant 0 : index
    %c0_27 = arith.constant 0 : index
    %c0_28 = arith.constant 0 : index
    %99 = vector.load %arg6[%c0_26, %c0_27, %c0_28] : memref<1x32x96xbf16, #tpu.memory_space<vmem>>, vector<1x32x96xbf16>
    %100 = vector.shape_cast %99 : vector<1x32x96xbf16> to vector<32x96xbf16>
    %c2_i32 = arith.constant 2 : i32
    %101 = tpu.dynamic_rotate %86 by %c2_i32 dim 1 : vector<32x128xf32>, i32 -> vector<32x128xf32>
    %c2_i32_29 = arith.constant 2 : i32
    %102 = vector.broadcast %c2_i32_29 : i32 to vector<1x128xi32>
    %103 = arith.cmpi sge, %0, %102 : vector<1x128xi32>
    %c128_i32_30 = arith.constant 128 : i32
    %104 = vector.broadcast %c128_i32_30 : i32 to vector<1x128xi32>
    %105 = arith.cmpi slt, %0, %104 : vector<1x128xi32>
    %106 = arith.andi %103, %105 : vector<1x128xi1>
    %107 = arith.extui %106 : vector<1x128xi1> to vector<1x128xi32>
    %108 = arith.sitofp %107 : vector<1x128xi32> to vector<1x128xf32>
    %109 = vector.broadcast %108 : vector<1x128xf32> to vector<32x128xf32>
    %110 = arith.mulf %101, %109 : vector<32x128xf32>
    %111 = arith.truncf %110 : vector<32x128xf32> to vector<32x128xbf16>
    %112 = vector.extract_strided_slice %100 {offsets = [0, 0], sizes = [32, 32], strides = [1, 1]} : vector<32x96xbf16> to vector<32x32xbf16>
    %cst_31 = arith.constant dense<0.000000e+00> : vector<32x128xf32>
    %113 = tpu.matmul %112, %111, %cst_31 {dimension_numbers = #tpu.dot_dimension_numbers<[1], [0], [0], [1], [0, 0, 1, 1], [], []>} : vector<32x32xbf16>, vector<32x128xbf16>, vector<32x128xf32> -> vector<32x128xf32>
    %114 = arith.truncf %86 : vector<32x128xf32> to vector<32x128xbf16>
    %115 = vector.extract_strided_slice %100 {offsets = [0, 32], sizes = [32, 32], strides = [1, 1]} : vector<32x96xbf16> to vector<32x32xbf16>
    %cst_32 = arith.constant dense<0.000000e+00> : vector<32x128xf32>
    %116 = tpu.matmul %115, %114, %cst_32 {dimension_numbers = #tpu.dot_dimension_numbers<[1], [0], [0], [1], [0, 0, 1, 1], [], []>} : vector<32x32xbf16>, vector<32x128xbf16>, vector<32x128xf32> -> vector<32x128xf32>
    %117 = arith.addf %113, %116 : vector<32x128xf32>
    %c126_i32 = arith.constant 126 : i32
    %118 = tpu.dynamic_rotate %86 by %c126_i32 dim 1 : vector<32x128xf32>, i32 -> vector<32x128xf32>
    %c0_i32_33 = arith.constant 0 : i32
    %119 = vector.broadcast %c0_i32_33 : i32 to vector<1x128xi32>
    %120 = arith.cmpi sge, %0, %119 : vector<1x128xi32>
    %c126_i32_34 = arith.constant 126 : i32
    %121 = vector.broadcast %c126_i32_34 : i32 to vector<1x128xi32>
    %122 = arith.cmpi slt, %0, %121 : vector<1x128xi32>
    %123 = arith.andi %120, %122 : vector<1x128xi1>
    %124 = arith.extui %123 : vector<1x128xi1> to vector<1x128xi32>
    %125 = arith.sitofp %124 : vector<1x128xi32> to vector<1x128xf32>
    %126 = vector.broadcast %125 : vector<1x128xf32> to vector<32x128xf32>
    %127 = arith.mulf %118, %126 : vector<32x128xf32>
    %128 = arith.truncf %127 : vector<32x128xf32> to vector<32x128xbf16>
    %129 = vector.extract_strided_slice %100 {offsets = [0, 64], sizes = [32, 32], strides = [1, 1]} : vector<32x96xbf16> to vector<32x32xbf16>
    %cst_35 = arith.constant dense<0.000000e+00> : vector<32x128xf32>
    %130 = tpu.matmul %129, %128, %cst_35 {dimension_numbers = #tpu.dot_dimension_numbers<[1], [0], [0], [1], [0, 0, 1, 1], [], []>} : vector<32x32xbf16>, vector<32x128xbf16>, vector<32x128xf32> -> vector<32x128xf32>
    %131 = arith.addf %117, %130 : vector<32x128xf32>
    %c0_36 = arith.constant 0 : index
    %c1 = arith.constant 1 : index
    %c0_37 = arith.constant 0 : index
    %c0_38 = arith.constant 0 : index
    %132 = vector.load %arg2[%c0_36, %c1, %c0_37, %c0_38] : memref<1x2x32x2xf32, #tpu.memory_space<vmem>>, vector<1x1x32x2xf32>
    %133 = vector.shape_cast %132 : vector<1x1x32x2xf32> to vector<32x2xf32>
    %134 = vector.extract_strided_slice %133 {offsets = [0, 0], sizes = [32, 1], strides = [1, 1]} : vector<32x2xf32> to vector<32x1xf32>
    %135 = vector.broadcast %134 : vector<32x1xf32> to vector<32x128xf32>
    %136 = arith.mulf %135, %131 : vector<32x128xf32>
    %137 = vector.extract_strided_slice %133 {offsets = [0, 1], sizes = [32, 1], strides = [1, 1]} : vector<32x2xf32> to vector<32x1xf32>
    %138 = vector.broadcast %137 : vector<32x1xf32> to vector<32x128xf32>
    %139 = arith.addf %136, %138 : vector<32x128xf32>
    %c1_39 = arith.constant 1 : index
    %c0_40 = arith.constant 0 : index
    %c0_41 = arith.constant 0 : index
    %140 = vector.load %arg3[%c1_39, %c0_40, %c0_41] : memref<2x32x3xf32, #tpu.memory_space<vmem>>, vector<1x32x3xf32>
    %141 = vector.shape_cast %140 : vector<1x32x3xf32> to vector<32x3xf32>
    %142 = vector.extract_strided_slice %141 {offsets = [0, 2], sizes = [1, 1], strides = [1, 1]} : vector<32x3xf32> to vector<1x1xf32>
    %cst_42 = arith.constant 0.000000e+00 : f32
    %143 = vector.broadcast %cst_42 : f32 to vector<32x128xf32>
    %144 = arith.cmpf oge, %139, %143 : vector<32x128xf32>
    %145 = vector.broadcast %142 : vector<1x1xf32> to vector<32x128xf32>
    %146 = arith.mulf %145, %139 : vector<32x128xf32>
    %147 = arith.select %144, %139, %146 : vector<32x128xi1>, vector<32x128xf32>
    %148 = vector.broadcast %4 : vector<1x128xf32> to vector<32x128xf32>
    %149 = arith.mulf %147, %148 : vector<32x128xf32>
    %150 = vector.shape_cast %149 : vector<32x128xf32> to vector<1x32x128xf32>
    %cst_43 = arith.constant dense<0.000000e+00> : vector<1xf32>
    %151 = vector.multi_reduction <add>, %150, %cst_43 [1, 2] : vector<1x32x128xf32> to vector<1xf32>
    %152 = vector.shape_cast %151 : vector<1xf32> to vector<1x1x1xf32>
    %153 = vector.extract %152[0, 0, 0] : f32 from vector<1x1x1xf32>
    %cst_44 = arith.constant 0.001953125 : f32
    %154 = arith.mulf %153, %cst_44 : f32
    %155 = vector.broadcast %154 : f32 to vector<32x128xf32>
    %156 = arith.subf %147, %155 : vector<32x128xf32>
    %157 = vector.broadcast %4 : vector<1x128xf32> to vector<32x128xf32>
    %158 = arith.mulf %156, %157 : vector<32x128xf32>
    %159 = arith.mulf %158, %158 : vector<32x128xf32>
    %160 = vector.shape_cast %159 : vector<32x128xf32> to vector<1x32x128xf32>
    %cst_45 = arith.constant dense<0.000000e+00> : vector<1xf32>
    %161 = vector.multi_reduction <add>, %160, %cst_45 [1, 2] : vector<1x32x128xf32> to vector<1xf32>
    %162 = vector.shape_cast %161 : vector<1xf32> to vector<1x1x1xf32>
    %163 = vector.extract %162[0, 0, 0] : f32 from vector<1x1x1xf32>
    %cst_46 = arith.constant 0.001953125 : f32
    %164 = arith.mulf %163, %cst_46 : f32
    %cst_47 = arith.constant 9.99999993E-9 : f32
    %165 = arith.addf %164, %cst_47 : f32
    %166 = math.rsqrt %165 : f32
    %167 = vector.extract_strided_slice %141 {offsets = [0, 0], sizes = [32, 1], strides = [1, 1]} : vector<32x3xf32> to vector<32x1xf32>
    %168 = vector.broadcast %154 : f32 to vector<32x128xf32>
    %169 = arith.subf %147, %168 : vector<32x128xf32>
    %170 = vector.broadcast %166 : f32 to vector<32x128xf32>
    %171 = arith.mulf %169, %170 : vector<32x128xf32>
    %172 = vector.broadcast %167 : vector<32x1xf32> to vector<32x128xf32>
    %173 = arith.mulf %172, %171 : vector<32x128xf32>
    %174 = vector.extract_strided_slice %141 {offsets = [0, 1], sizes = [32, 1], strides = [1, 1]} : vector<32x3xf32> to vector<32x1xf32>
    %175 = vector.broadcast %174 : vector<32x1xf32> to vector<32x128xf32>
    %176 = arith.addf %173, %175 : vector<32x128xf32>
    %177 = arith.addf %86, %176 : vector<32x128xf32>
    %178 = vector.broadcast %4 : vector<1x128xf32> to vector<32x128xf32>
    %179 = arith.mulf %177, %178 : vector<32x128xf32>
    %c1_48 = arith.constant 1 : index
    %c0_49 = arith.constant 0 : index
    %c0_50 = arith.constant 0 : index
    %180 = vector.load %arg4[%c1_48, %c0_49, %c0_50] : memref<2x8x33xf32, #tpu.memory_space<vmem>>, vector<1x8x33xf32>
    %181 = vector.shape_cast %180 : vector<1x8x33xf32> to vector<8x33xf32>
    %182 = vector.extract_strided_slice %181 {offsets = [0, 0], sizes = [8, 32], strides = [1, 1]} : vector<8x33xf32> to vector<8x32xf32>
    %183 = arith.truncf %182 : vector<8x32xf32> to vector<8x32xbf16>
    %184 = arith.truncf %179 : vector<32x128xf32> to vector<32x128xbf16>
    %cst_51 = arith.constant dense<0.000000e+00> : vector<8x128xf32>
    %185 = tpu.matmul %183, %184, %cst_51 {dimension_numbers = #tpu.dot_dimension_numbers<[1], [0], [0], [1], [0, 0, 1, 1], [], []>} : vector<8x32xbf16>, vector<32x128xbf16>, vector<8x128xf32> -> vector<8x128xf32>
    %186 = vector.extract_strided_slice %181 {offsets = [0, 32], sizes = [8, 1], strides = [1, 1]} : vector<8x33xf32> to vector<8x1xf32>
    %187 = vector.broadcast %186 : vector<8x1xf32> to vector<8x128xf32>
    %188 = arith.addf %185, %187 : vector<8x128xf32>
    %c0_52 = arith.constant 0 : index
    %c1_53 = arith.constant 1 : index
    %c0_54 = arith.constant 0 : index
    %c0_55 = arith.constant 0 : index
    %189 = vector.load %arg8[%c0_52, %c1_53, %c0_54, %c0_55] : memref<1x2x8x128xf32, #tpu.memory_space<vmem>>, vector<1x1x8x128xf32>
    %190 = vector.shape_cast %189 : vector<1x1x8x128xf32> to vector<8x128xf32>
    %191 = vector.shape_cast %188 : vector<8x128xf32> to vector<1x1x8x128xf32>
    tpu.vector_store %arg8[%c0_52, %c1_53, %c0_54, %c0_55], %191 {strides = array<i32>} : memref<1x2x8x128xf32, #tpu.memory_space<vmem>>, vector<1x1x8x128xf32>,
    %c0_56 = arith.constant 0 : index
    %c0_57 = arith.constant 0 : index
    %c0_58 = arith.constant 0 : index
    %192 = vector.load %arg7[%c0_56, %c0_57, %c0_58] : memref<1x32x128xf32, #tpu.memory_space<vmem>>, vector<1x32x128xf32>
    %193 = vector.shape_cast %192 : vector<1x32x128xf32> to vector<32x128xf32>
    %194 = vector.shape_cast %179 : vector<32x128xf32> to vector<1x32x128xf32>
    tpu.vector_store %arg7[%c0_56, %c0_57, %c0_58], %194 {strides = array<i32>} : memref<1x32x128xf32, #tpu.memory_space<vmem>>, vector<1x32x128xf32>,
    return
  }
  func.func @transform_0(%arg0: i32) -> (i32, i32, i32) {
    %c0_i32 = arith.constant 0 : i32
    %c0_i32_0 = arith.constant 0 : i32
    %c0_i32_1 = arith.constant 0 : i32
    return %arg0, %c0_i32, %c0_i32_0 : i32, i32, i32
  }
  func.func @transform_1(%arg0: i32) -> (i32, i32, i32, i32) {
    %c0_i32 = arith.constant 0 : i32
    %c0_i32_0 = arith.constant 0 : i32
    %c0_i32_1 = arith.constant 0 : i32
    %c0_i32_2 = arith.constant 0 : i32
    return %arg0, %c0_i32, %c0_i32_0, %c0_i32_1 : i32, i32, i32, i32
  }
  func.func @transform_2(%arg0: i32) -> (i32, i32, i32) {
    %c0_i32 = arith.constant 0 : i32
    %c0_i32_0 = arith.constant 0 : i32
    %c0_i32_1 = arith.constant 0 : i32
    %c0_i32_2 = arith.constant 0 : i32
    return %c0_i32, %c0_i32_0, %c0_i32_1 : i32, i32, i32
  }
  func.func @transform_3(%arg0: i32) -> (i32, i32, i32) {
    %c0_i32 = arith.constant 0 : i32
    %c0_i32_0 = arith.constant 0 : i32
    %c0_i32_1 = arith.constant 0 : i32
    %c0_i32_2 = arith.constant 0 : i32
    return %c0_i32, %c0_i32_0, %c0_i32_1 : i32, i32, i32
  }
  func.func @transform_4(%arg0: i32) -> (i32, i32) {
    %c0_i32 = arith.constant 0 : i32
    %c0_i32_0 = arith.constant 0 : i32
    %c0_i32_1 = arith.constant 0 : i32
    return %c0_i32, %c0_i32_0 : i32, i32
  }
  func.func @transform_5(%arg0: i32) -> (i32, i32, i32) {
    %c0_i32 = arith.constant 0 : i32
    %c0_i32_0 = arith.constant 0 : i32
    %c0_i32_1 = arith.constant 0 : i32
    %c0_i32_2 = arith.constant 0 : i32
    return %c0_i32, %c0_i32_0, %c0_i32_1 : i32, i32, i32
  }
  func.func @transform_6(%arg0: i32) -> (i32, i32, i32) {
    %c0_i32 = arith.constant 0 : i32
    %c0_i32_0 = arith.constant 0 : i32
    %c0_i32_1 = arith.constant 0 : i32
    return %arg0, %c0_i32, %c0_i32_0 : i32, i32, i32
  }
  func.func @transform_7(%arg0: i32) -> (i32, i32, i32, i32) {
    %c0_i32 = arith.constant 0 : i32
    %c0_i32_0 = arith.constant 0 : i32
    %c0_i32_1 = arith.constant 0 : i32
    %c0_i32_2 = arith.constant 0 : i32
    return %arg0, %c0_i32, %c0_i32_0, %c0_i32_1 : i32, i32, i32, i32
  }
}

</mosaic_0001>

<llo_original>
// kernel: tpu_custom_call.1
$region0: #{tpu_custom_call.1}
  #allocation0 [shape = 'u32[]', space=smem, size = 0x4, offset = 0x4, fixed_abs, tag = 'smem constant byte address 0x4 - core index']
  #allocation1 [shape = 'u32[144,128]{1,0:T(1,128)}', space=vmem, size = 0x12000, scoped, tag = 'internal scratch']
  %s0 = inlined_call_operand.hbm [shape: f32[2,1,128], index: 0, kind: input, shape index: {}]
  %s1 = inlined_call_operand.hbm [shape: f32[2,2,32,2], index: 1, kind: input, shape index: {}]
  %s2 = inlined_call_operand.hbm [shape: f32[2,32,3], index: 2, kind: input, shape index: {}]
  %s3 = inlined_call_operand.hbm [shape: f32[2,8,33], index: 3, kind: input, shape index: {}]
  %s4 = inlined_call_operand.hbm [shape: f32[32,3], index: 4, kind: input, shape index: {}]
  %s5 = inlined_call_operand.hbm [shape: bf16[1,32,96], index: 5, kind: input, shape index: {}]
  %s6 = inlined_call_operand.hbm [shape: f32[2,32,128], index: 6, kind: output, shape index: {0}]
  %s7 = inlined_call_operand.hbm [shape: f32[2,2,8,128], index: 7, kind: output, shape index: {1}]
  %8 = xla_tuple %s6, %s7
  %s9 = sld [smem:[#allocation0]]
  $region89: #{tpu_custom_call.1} parent=0
    _
  %s11 = ssub.s32 1, %s9
  %s12 = scalar_select 0, %s11, %s9
  $region1: #{tpu_custom_call.1} parent=0
    #allocation2 [shape = 'u8[1024]{0}', space=vmem, size = 0x400, scoped, tag = 'input window, operand 0']
    #allocation3 [shape = 's32[2]{0}', space=sflag, size = 0x8, scoped, tag = 'scoped memory for tpu_custom_call.1']
    #allocation4 [shape = 's32[2]{0}', space=sflag, size = 0x8, scoped, tag = 'scoped memory for tpu_custom_call.1']
    #allocation5 [shape = 'u8[65536]{0}', space=vmem, size = 0x10000, scoped, tag = 'input window, operand 1']
    #allocation6 [shape = 's32[2]{0}', space=sflag, size = 0x8, scoped, tag = 'scoped memory for tpu_custom_call.1']
    #allocation7 [shape = 'u8[32768]{0}', space=vmem, size = 0x8000, scoped, tag = 'input window, operand 2, single buffered']
    #allocation8 [shape = 'u8[8192]{0}', space=vmem, size = 0x2000, scoped, tag = 'input window, operand 3, single buffered']
    #allocation9 [shape = 's32[1]{0}', space=sflag, size = 0x4, scoped, tag = 'scoped memory for tpu_custom_call.1']
    #allocation10 [shape = 'u8[16384]{0}', space=vmem, size = 0x4000, scoped, tag = 'input window, operand 4, single buffered']
    #allocation11 [shape = 'u8[8192]{0}', space=vmem, size = 0x2000, scoped, tag = 'input window, operand 5, single buffered']
    #allocation12 [shape = 's32[1]{0}', space=sflag, size = 0x4, scoped, tag = 'scoped memory for tpu_custom_call.1']
    #allocation13 [shape = 'u8[32768]{0}', space=vmem, size = 0x8000, scoped, tag = 'output window, operand 0']
    #allocation14 [shape = 'u8[16384]{0}', space=vmem, size = 0x4000, scoped, tag = 'output window, operand 1']
    #allocation15 [shape = 's32[2]{0}', space=sflag, size = 0x8, scoped, tag = 'scoped memory for tpu_custom_call.1']
    %13 = vsyncpa [#allocation3], 0
    %s14 = scalar_lea.sflag [#allocation3], 1
    %15 = vsyncpa %s14, 0
    %16 = vsyncpa [#allocation6], 0
    %s17 = scalar_lea.sflag [#allocation6], 1
    %18 = vsyncpa %s17, 0
    %19 = vsyncpa [#allocation9], 0
    %20 = vsyncpa [#allocation12], 0
    %21 = vsyncpa [#allocation4], 0
    %s22 = scalar_lea.sflag [#allocation4], 1
    %23 = vsyncpa %s22, 0
    %24 = vsyncpa [#allocation15], 0
    %s25 = scalar_lea.sflag [#allocation15], 1
    %26 = vsyncpa %s25, 0
    loop: start=0, step=1, limit=4
    $region2: #{tpu_custom_call.1} parent=1 // loop_pre_header
      _
    $region3: #{tpu_custom_call.1} parent=1 // loop_header
      %s28 = sphi 0, %s32
      %p29 = scmp.ge.s32.totalorder %s28, 4
      %s38 = sphi 0, %s40
      %s41 = sphi 0, %s38
      %s42 = sphi 0, %s41
      %s58 = sphi 0, %s42
      %s64 = sphi 0, %s66
      %s67 = sphi 0, %s64
      %s68 = sphi 0, %s67
      %s84 = sphi 0, %s68
      %s88 = sphi 0, %s88
      %s90 = sphi 0, %s88
      %s91 = sphi 0, %s90
      %s105 = sphi 0, %s91
      %s109 = sphi 0, %s109
      %s111 = sphi 0, %s109
      %s112 = sphi 0, %s111
      %s126 = sphi 0, %s112
      %s130 = sphi 0, %s130
      %s132 = sphi 0, %s130
      %s133 = sphi 0, %s132
      %s147 = sphi 0, %s133
      %s151 = sphi 0, %s151
      %s153 = sphi 0, %s151
      %s154 = sphi 0, %s153
      %s168 = sphi 0, %s154
      %s174 = sphi 0, %s176
      %s177 = sphi 0, %s174
      %s178 = sphi 0, %s177
      %s194 = sphi 0, %s178
      %s200 = sphi 0, %s202
      %s203 = sphi 0, %s200
      %s204 = sphi 0, %s203
      %s220 = sphi 0, %s204
    $region4: #{tpu_custom_call.1} parent=1 // loop_header_branch
      %31 = sbr.rel (%p29) target = $region8
    $region5: #{tpu_custom_call.1} parent=1 // loop_body
      %s33 = ssub.s32 %s28, 1
      %s34 = ssub.s32 %s28, 2
      %s35 = sadd.s32 %s28, 1
      %s36 = ssub.s32 %s28, %s35
      %p37 = scmp.eq.s32.totalorder %s36, 0
      %s39 = sadd.s32 %s38, 1
      %s40 = scalar_select %p37, %s38, %s39
      %p43 = pneg %p37
      %p44 = scmp.eq.s32.totalorder %s28, 1
      %p45 = por %p43, %p44
      %p46 = scmp.ne.s32.totalorder %s38, %s41
      %p47 = scmp.eq.s32.totalorder %s28, 0
      %p48 = por %p46, %p47
      %p49 = scmp.ne.s32.totalorder %s38, %s41
      %p50 = scmp.eq.s32.totalorder %s33, 1
      %p51 = por %p49, %p50
      %p52 = scmp.ne.s32.totalorder %s41, %s42
      %p53 = scmp.eq.s32.totalorder %s33, 0
      %p54 = por %p52, %p53
      %p55 = scmp.ne.s32.totalorder %s41, %s42
      %p56 = scmp.eq.s32.totalorder %s34, 1
      %p57 = por %p55, %p56
      %p59 = scmp.ne.s32.totalorder %s42, %s58
      %p60 = scmp.eq.s32.totalorder %s34, 0
      %p61 = por %p59, %p60
      %s62 = ssub.s32 %s28, %s35
      %p63 = scmp.eq.s32.totalorder %s62, 0
      %s65 = sadd.s32 %s64, 1
      %s66 = scalar_select %p63, %s64, %s65
      %p69 = pneg %p63
      %p70 = scmp.eq.s32.totalorder %s28, 1
      %p71 = por %p69, %p70
      %p72 = scmp.ne.s32.totalorder %s64, %s67
      %p73 = scmp.eq.s32.totalorder %s28, 0
      %p74 = por %p72, %p73
      %p75 = scmp.ne.s32.totalorder %s64, %s67
      %p76 = scmp.eq.s32.totalorder %s33, 1
      %p77 = por %p75, %p76
      %p78 = scmp.ne.s32.totalorder %s67, %s68
      %p79 = scmp.eq.s32.totalorder %s33, 0
      %p80 = por %p78, %p79
      %p81 = scmp.ne.s32.totalorder %s67, %s68
      %p82 = scmp.eq.s32.totalorder %s34, 1
      %p83 = por %p81, %p82
      %p85 = scmp.ne.s32.totalorder %s68, %s84
      %p86 = scmp.eq.s32.totalorder %s34, 0
      %p87 = por %p85, %p86
      %s89 = sadd.s32 %s88, 1
      %p92 = scmp.eq.s32.totalorder %s28, 1
      %p93 = scmp.ne.s32.totalorder %s88, %s90
      %p94 = scmp.eq.s32.totalorder %s28, 0
      %p95 = por %p93, %p94
      %p96 = scmp.ne.s32.totalorder %s88, %s90
      %p97 = scmp.eq.s32.totalorder %s33, 1
      %p98 = por %p96, %p97
      %p99 = scmp.ne.s32.totalorder %s90, %s91
      %p100 = scmp.eq.s32.totalorder %s33, 0
      %p101 = por %p99, %p100
      %p102 = scmp.ne.s32.totalorder %s90, %s91
      %p103 = scmp.eq.s32.totalorder %s34, 1
      %p104 = por %p102, %p103
      %p106 = scmp.ne.s32.totalorder %s91, %s105
      %p107 = scmp.eq.s32.totalorder %s34, 0
      %p108 = por %p106, %p107
      %s110 = sadd.s32 %s109, 1
      %p113 = scmp.eq.s32.totalorder %s28, 1
      %p114 = scmp.ne.s32.totalorder %s109, %s111
      %p115 = scmp.eq.s32.totalorder %s28, 0
      %p116 = por %p114, %p115
      %p117 = scmp.ne.s32.totalorder %s109, %s111
      %p118 = scmp.eq.s32.totalorder %s33, 1
      %p119 = por %p117, %p118
      %p120 = scmp.ne.s32.totalorder %s111, %s112
      %p121 = scmp.eq.s32.totalorder %s33, 0
      %p122 = por %p120, %p121
      %p123 = scmp.ne.s32.totalorder %s111, %s112
      %p124 = scmp.eq.s32.totalorder %s34, 1
      %p125 = por %p123, %p124
      %p127 = scmp.ne.s32.totalorder %s112, %s126
      %p128 = scmp.eq.s32.totalorder %s34, 0
      %p129 = por %p127, %p128
      %s131 = sadd.s32 %s130, 1
      %p134 = scmp.eq.s32.totalorder %s28, 1
      %p135 = scmp.ne.s32.totalorder %s130, %s132
      %p136 = scmp.eq.s32.totalorder %s28, 0
      %p137 = por %p135, %p136
      %p138 = scmp.ne.s32.totalorder %s130, %s132
      %p139 = scmp.eq.s32.totalorder %s33, 1
      %p140 = por %p138, %p139
      %p141 = scmp.ne.s32.totalorder %s132, %s133
      %p142 = scmp.eq.s32.totalorder %s33, 0
      %p143 = por %p141, %p142
      %p144 = scmp.ne.s32.totalorder %s132, %s133
      %p145 = scmp.eq.s32.totalorder %s34, 1
      %p146 = por %p144, %p145
      %p148 = scmp.ne.s32.totalorder %s133, %s147
      %p149 = scmp.eq.s32.totalorder %s34, 0
      %p150 = por %p148, %p149
      %s152 = sadd.s32 %s151, 1
      %p155 = scmp.eq.s32.totalorder %s28, 1
      %p156 = scmp.ne.s32.totalorder %s151, %s153
      %p157 = scmp.eq.s32.totalorder %s28, 0
      %p158 = por %p156, %p157
      %p159 = scmp.ne.s32.totalorder %s151, %s153
      %p160 = scmp.eq.s32.totalorder %s33, 1
      %p161 = por %p159, %p160
      %p162 = scmp.ne.s32.totalorder %s153, %s154
      %p163 = scmp.eq.s32.totalorder %s33, 0
      %p164 = por %p162, %p163
      %p165 = scmp.ne.s32.totalorder %s153, %s154
      %p166 = scmp.eq.s32.totalorder %s34, 1
      %p167 = por %p165, %p166
      %p169 = scmp.ne.s32.totalorder %s154, %s168
      %p170 = scmp.eq.s32.totalorder %s34, 0
      %p171 = por %p169, %p170
      %s172 = ssub.s32 %s28, %s35
      %p173 = scmp.eq.s32.totalorder %s172, 0
      %s175 = sadd.s32 %s174, 1
      %s176 = scalar_select %p173, %s174, %s175
      %p179 = pneg %p173
      %p180 = scmp.eq.s32.totalorder %s28, 1
      %p181 = por %p179, %p180
      %p182 = scmp.ne.s32.totalorder %s174, %s177
      %p183 = scmp.eq.s32.totalorder %s28, 0
      %p184 = por %p182, %p183
      %p185 = scmp.ne.s32.totalorder %s174, %s177
      %p186 = scmp.eq.s32.totalorder %s33, 1
      %p187 = por %p185, %p186
      %p188 = scmp.ne.s32.totalorder %s177, %s178
      %p189 = scmp.eq.s32.totalorder %s33, 0
      %p190 = por %p188, %p189
      %p191 = scmp.ne.s32.totalorder %s177, %s178
      %p192 = scmp.eq.s32.totalorder %s34, 1
      %p193 = por %p191, %p192
      %p195 = scmp.ne.s32.totalorder %s178, %s194
      %p196 = scmp.eq.s32.totalorder %s34, 0
      %p197 = por %p195, %p196
      %s198 = ssub.s32 %s28, %s35
      %p199 = scmp.eq.s32.totalorder %s198, 0
      %s201 = sadd.s32 %s200, 1
      %s202 = scalar_select %p199, %s200, %s201
      %p205 = pneg %p199
      %p206 = scmp.eq.s32.totalorder %s28, 1
      %p207 = por %p205, %p206
      %p208 = scmp.ne.s32.totalorder %s200, %s203
      %p209 = scmp.eq.s32.totalorder %s28, 0
      %p210 = por %p208, %p209
      %p211 = scmp.ne.s32.totalorder %s200, %s203
      %p212 = scmp.eq.s32.totalorder %s33, 1
      %p213 = por %p211, %p212
      %p214 = scmp.ne.s32.totalorder %s203, %s204
      %p215 = scmp.eq.s32.totalorder %s33, 0
      %p216 = por %p214, %p215
      %p217 = scmp.ne.s32.totalorder %s203, %s204
      %p218 = scmp.eq.s32.totalorder %s34, 1
      %p219 = por %p217, %p218
      %p221 = scmp.ne.s32.totalorder %s204, %s220
      %p222 = scmp.eq.s32.totalorder %s34, 0
      %p223 = por %p221, %p222
      %p224 = scmp.le.s32.totalorder 1, %s28
      %p225 = scmp.lt.s32.totalorder %s28, 3
      %p226 = pnand %p224, %p225
      %p227 = pneg %p226
      // Predicated region
      $region9: #{tpu_custom_call.1} parent=5 // pred_check
        _
      $region10: #{tpu_custom_call.1} parent=5 // pred_check_branch
        %229 = sbr.rel (%p226) target = $region12
      $region11: #{tpu_custom_call.1} parent=5 // pred_region
        %s230 = ssub.s32 %s28, 1
        // Predicated region
        $region13: #{tpu_custom_call.1} parent=11 // pred_check
          %p231 = pneg %p101
        $region14: #{tpu_custom_call.1} parent=11 // pred_check_branch
          %233 = sbr.rel (%p231) target = $region16
        $region15: #{tpu_custom_call.1} parent=11 // pred_region
          %s235 = ssub.s32 1024, 1024
          %236 = vsyncadd [#allocation6], %s235
          %s237 = sshll.u32 [#allocation7], 4
          %s238 = int_to_ptr.vmem [resolvable:$true] %s237
          %243 = dma.hbm_to_vmem [thread:$0]  %s2, 1024, %s238, [#allocation6], 128, 128, 8
        $region16: #{tpu_custom_call.1} parent=11 // pred_fallthru
          _
        // Predicated region
        $region17: #{tpu_custom_call.1} parent=11 // pred_check
          %p244 = pneg %p122
        $region18: #{tpu_custom_call.1} parent=11 // pred_check_branch
          %246 = sbr.rel (%p244) target = $region20
        $region19: #{tpu_custom_call.1} parent=11 // pred_region
          %s248 = ssub.s32 256, 256
          %249 = vsyncadd [#allocation9], %s248
          %s250 = sshll.u32 [#allocation8], 4
          %s251 = int_to_ptr.vmem [resolvable:$true] %s250
          %256 = dma.hbm_to_vmem [thread:$0]  %s3, 256, %s251, [#allocation9], 128, 128, 8
        $region20: #{tpu_custom_call.1} parent=11 // pred_fallthru
          _
        // Predicated region
        $region21: #{tpu_custom_call.1} parent=11 // pred_check
          %p257 = pneg %p143
        $region22: #{tpu_custom_call.1} parent=11 // pred_check_branch
          %259 = sbr.rel (%p257) target = $region24
        $region23: #{tpu_custom_call.1} parent=11 // pred_region
          %s261 = ssub.s32 512, 512
          %262 = vsyncadd [#allocation9], %s261
          %s263 = sshll.u32 [#allocation10], 4
          %s264 = int_to_ptr.vmem [resolvable:$true] %s263
          %269 = dma.hbm_to_vmem [thread:$0]  %s4, 512, %s264, [#allocation9], 128, 128, 8
        $region24: #{tpu_custom_call.1} parent=11 // pred_fallthru
          _
        // Predicated region
        $region25: #{tpu_custom_call.1} parent=11 // pred_check
          %p270 = pneg %p164
        $region26: #{tpu_custom_call.1} parent=11 // pred_check_branch
          %272 = sbr.rel (%p270) target = $region28
        $region27: #{tpu_custom_call.1} parent=11 // pred_region
          %s274 = ssub.s32 256, 256
          %275 = vsyncadd [#allocation12], %s274
          %s276 = sshll.u32 [#allocation11], 4
          %s277 = int_to_ptr.vmem [resolvable:$true] %s276
          %282 = dma.hbm_to_vmem [thread:$0]  %s5, 256, %s277, [#allocation12], 64, 64, 4
        $region28: #{tpu_custom_call.1} parent=11 // pred_fallthru
          _
      $region12: #{tpu_custom_call.1} parent=5 // pred_fallthru
        _
      %p283 = scmp.lt.s32.totalorder %s28, 2
      // Predicated region
      $region29: #{tpu_custom_call.1} parent=5 // pred_check
        %p284 = pneg %p283
      $region30: #{tpu_custom_call.1} parent=5 // pred_check_branch
        %286 = sbr.rel (%p284) target = $region32
      $region31: #{tpu_custom_call.1} parent=5 // pred_region
        // Predicated region
        $region33: #{tpu_custom_call.1} parent=31 // pred_check
          %p287 = pneg %p48
        $region34: #{tpu_custom_call.1} parent=31 // pred_check_branch
          %289 = sbr.rel (%p287) target = $region36
        $region35: #{tpu_custom_call.1} parent=31 // pred_region
          %s290 = sand.u32 %s38, 1
          %s291 = scalar_lea.sflag [#allocation3], %s290
          %s292 = sand.u32 %s38, 1
          %s293 = scalar_lea.vmem [#allocation2], %s292
          %s295 = ssub.s32 16, 16
          %296 = vsyncadd %s291, %s295
          %s297 = smul.addr %s28, 16
          %s298 = scalar_lea.hbm %s0, %s297
          %s300 = sshll.u32 %s293, 4
          %s301 = int_to_ptr.vmem [resolvable:$true] %s300
          %303 = dma.hbm_to_vmem [thread:$0]  %s298, 16, %s301, %s291
        $region36: #{tpu_custom_call.1} parent=31 // pred_fallthru
          _
        // Predicated region
        $region37: #{tpu_custom_call.1} parent=31 // pred_check
          %p304 = pneg %p74
        $region38: #{tpu_custom_call.1} parent=31 // pred_check_branch
          %306 = sbr.rel (%p304) target = $region40
        $region39: #{tpu_custom_call.1} parent=31 // pred_region
          %s307 = sand.u32 %s28, 1
          %s308 = scalar_lea.sflag [#allocation6], %s307
          %s309 = sand.u32 %s64, 1
          %s310 = smul.addr %s309, 64
          %s311 = scalar_lea.vmem [#allocation5], %s310
          %s313 = ssub.s32 1024, 1024
          %314 = vsyncadd %s308, %s313
          %s315 = smul.addr %s28, 8
          %s316 = smul.addr %s315, 128
          %s317 = scalar_lea.hbm %s1, %s316
          %s318 = sshll.u32 %s311, 4
          %s319 = int_to_ptr.vmem [resolvable:$true] %s318
          %324 = dma.hbm_to_vmem [thread:$0]  %s317, 1024, %s319, %s308, 128, 128, 8
        $region40: #{tpu_custom_call.1} parent=31 // pred_fallthru
          _
      $region32: #{tpu_custom_call.1} parent=5 // pred_fallthru
        _
      %p325 = scmp.le.s32.totalorder 1, %s28
      %p326 = scmp.lt.s32.totalorder %s28, 3
      %p327 = pnand %p325, %p326
      %p328 = pneg %p327
      // Predicated region
      $region41: #{tpu_custom_call.1} parent=5 // pred_check
        _
      $region42: #{tpu_custom_call.1} parent=5 // pred_check_branch
        %330 = sbr.rel (%p327) target = $region44
      $region43: #{tpu_custom_call.1} parent=5 // pred_region
        %s331 = ssub.s32 %s28, 1
        %s332 = sand.u32 %s41, 1
        %s333 = scalar_lea.sflag [#allocation3], %s332
        %s334 = sand.u32 %s41, 1
        %s335 = scalar_lea.vmem [#allocation2], %s334
        // Predicated region
        $region45: #{tpu_custom_call.1} parent=43 // pred_check
          %p336 = pneg %p54
        $region46: #{tpu_custom_call.1} parent=43 // pred_check_branch
          %338 = sbr.rel (%p336) target = $region48
        $region47: #{tpu_custom_call.1} parent=43 // pred_region
          %339 = dma.done %s333, 16
        $region48: #{tpu_custom_call.1} parent=43 // pred_fallthru
          _
        %s340 = sand.u32 %s33, 1
        %s341 = scalar_lea.sflag [#allocation6], %s340
        %s342 = sand.u32 %s67, 1
        %s343 = smul.addr %s342, 64
        %s344 = scalar_lea.vmem [#allocation5], %s343
        // Predicated region
        $region49: #{tpu_custom_call.1} parent=43 // pred_check
          %p345 = pneg %p80
        $region50: #{tpu_custom_call.1} parent=43 // pred_check_branch
          %347 = sbr.rel (%p345) target = $region52
        $region51: #{tpu_custom_call.1} parent=43 // pred_region
          %348 = dma.done %s341, 1024
        $region52: #{tpu_custom_call.1} parent=43 // pred_fallthru
          _
        // Predicated region
        $region53: #{tpu_custom_call.1} parent=43 // pred_check
          %p349 = pneg %p101
        $region54: #{tpu_custom_call.1} parent=43 // pred_check_branch
          %351 = sbr.rel (%p349) target = $region56
        $region55: #{tpu_custom_call.1} parent=43 // pred_region
          %352 = dma.done [#allocation6], 1024
        $region56: #{tpu_custom_call.1} parent=43 // pred_fallthru
          _
        // Predicated region
        $region57: #{tpu_custom_call.1} parent=43 // pred_check
          %p353 = pneg %p122
        $region58: #{tpu_custom_call.1} parent=43 // pred_check_branch
          %355 = sbr.rel (%p353) target = $region60
        $region59: #{tpu_custom_call.1} parent=43 // pred_region
          %356 = dma.done [#allocation9], 256
        $region60: #{tpu_custom_call.1} parent=43 // pred_fallthru
          _
        // Predicated region
        $region61: #{tpu_custom_call.1} parent=43 // pred_check
          %p357 = pneg %p143
        $region62: #{tpu_custom_call.1} parent=43 // pred_check_branch
          %359 = sbr.rel (%p357) target = $region64
        $region63: #{tpu_custom_call.1} parent=43 // pred_region
          %360 = dma.done [#allocation9], 512
        $region64: #{tpu_custom_call.1} parent=43 // pred_fallthru
          _
        // Predicated region
        $region65: #{tpu_custom_call.1} parent=43 // pred_check
          %p361 = pneg %p164
        $region66: #{tpu_custom_call.1} parent=43 // pred_check_branch
          %363 = sbr.rel (%p361) target = $region68
        $region67: #{tpu_custom_call.1} parent=43 // pred_region
          %364 = dma.done [#allocation12], 256
        $region68: #{tpu_custom_call.1} parent=43 // pred_fallthru
          _
        %s365 = sand.u32 %s41, 1
        %s366 = scalar_lea.sflag [#allocation3], %s365
        %s367 = sand.u32 %s41, 1
        %s368 = scalar_lea.vmem [#allocation2], %s367
        %p369 = pneg %p54
        %p370 = pneg %p51
        %s371 = sand.u32 %s33, 1
        %s372 = scalar_lea.sflag [#allocation6], %s371
        %s373 = sand.u32 %s67, 1
        %s374 = smul.addr %s373, 64
        %s375 = scalar_lea.vmem [#allocation5], %s374
        %p376 = pneg %p80
        %p377 = pneg %p77
        %p378 = pneg %p101
        %p379 = pneg %p98
        %p380 = pneg %p122
        %p381 = pneg %p119
        %p382 = pneg %p143
        %p383 = pneg %p140
        %p384 = pneg %p164
        %p385 = pneg %p161
        %p386 = pneg %p190
        %p387 = pneg %p187
        %s388 = sand.u32 %s177, 1
        %s389 = scalar_lea.sflag [#allocation4], %s388
        %s390 = sand.u32 %s177, 1
        %s391 = smul.addr %s390, 32
        %s392 = scalar_lea.vmem [#allocation13], %s391
        %p393 = pneg %p216
        %p394 = pneg %p213
        %s395 = sand.u32 %s203, 1
        %s396 = scalar_lea.sflag [#allocation15], %s395
        %s397 = sand.u32 %s203, 1
        %s398 = smul.addr %s397, 16
        %s399 = scalar_lea.vmem [#allocation14], %s398
        %v401 = vlaneseq
        %v402 = vand.u32 %v401, 127
        %vm403 = vcmp.lt.s32.totalorder %v402, 16
        %v404 = vsel %vm403, 1, 0
        %v405 = vcvt.s32.f32 %v404
        %v406 = vld [vmem:[%s335] sm:$0x1]
        %v407 = vld [vmem:[#allocation10] sm:$0xff]
        %v408 = vld [vmem:[#allocation10 + $0x8] sm:$0xff]
        %v409 = vld [vmem:[#allocation10 + $0x10] sm:$0xff]
        %v410 = vld [vmem:[#allocation10 + $0x18] sm:$0xff]
        %411 = vrot.lane.b32.xlu0 %v406, 1
        %v412 = vpop.permute.xlu0 %411
        %vm413 = vcmp.ge.s32.totalorder %v402, 1
        %vm414 = vcmp.lt.s32.totalorder %v402, 128
        %vm415 = vmand %vm413, %vm414
        %v416 = vsel %vm415, 1, 0
        %v417 = vcvt.s32.f32 %v416
        %v418 = vmul.f32 %v412, %v417
        %420 = vset.pattern.permute.xlu0 0
        %421 = vperm.xlu0 %420, %v407
        %v422 = vpop.permute.xlu0 %421
        %425 = vset.pattern.permute.xlu0 0
        %426 = vperm.xlu0 %425, %v408
        %v427 = vpop.permute.xlu0 %426
        %430 = vset.pattern.permute.xlu0 0
        %431 = vperm.xlu0 %430, %v409
        %v432 = vpop.permute.xlu0 %431
        %435 = vset.pattern.permute.xlu0 0
        %436 = vperm.xlu0 %435, %v410
        %v437 = vpop.permute.xlu0 %436
        %v439 = vlaneseq
        %v440 = vshrl.u32 %v439, 7
        %v441 = vsub.s32 0, %v440
        %v442 = vrot.slane %v418, %v441
        %v443 = vmul.f32 %v422, %v442
        %v444 = vmul.f32 %v427, %v442
        %v445 = vmul.f32 %v432, %v442
        %v446 = vmul.f32 %v437, %v442
        %447 = vset.pattern.permute.xlu0 1
        %448 = vperm.xlu0 %447, %v407
        %v449 = vpop.permute.xlu0 %448
        %451 = vset.pattern.permute.xlu0 1
        %452 = vperm.xlu0 %451, %v408
        %v453 = vpop.permute.xlu0 %452
        %455 = vset.pattern.permute.xlu0 1
        %456 = vperm.xlu0 %455, %v409
        %v457 = vpop.permute.xlu0 %456
        %459 = vset.pattern.permute.xlu0 1
        %460 = vperm.xlu0 %459, %v410
        %v461 = vpop.permute.xlu0 %460
        %v464 = vlaneseq
        %v465 = vshrl.u32 %v464, 7
        %v466 = vsub.s32 0, %v465
        %v467 = vrot.slane %v406, %v466
        %v469 = vmul.f32 %v449, %v467
        %v470 = vmul.f32 %v453, %v467
        %v471 = vmul.f32 %v457, %v467
        %v472 = vmul.f32 %v461, %v467
        %v473 = vadd.f32 %v443, %v469
        %v474 = vadd.f32 %v444, %v470
        %v475 = vadd.f32 %v445, %v471
        %v476 = vadd.f32 %v446, %v472
        %477 = vrot.lane.b32.xlu0 %v406, 127
        %v478 = vpop.permute.xlu0 %477
        %vm479 = vcmp.ge.s32.totalorder %v402, 0
        %vm480 = vcmp.lt.s32.totalorder %v402, 127
        %vm481 = vmand %vm479, %vm480
        %v482 = vsel %vm481, 1, 0
        %v483 = vcvt.s32.f32 %v482
        %v484 = vmul.f32 %v478, %v483
        %485 = vset.pattern.permute.xlu0 2
        %486 = vperm.xlu0 %485, %v407
        %v487 = vpop.permute.xlu0 %486
        %489 = vset.pattern.permute.xlu0 2
        %490 = vperm.xlu0 %489, %v408
        %v491 = vpop.permute.xlu0 %490
        %493 = vset.pattern.permute.xlu0 2
        %494 = vperm.xlu0 %493, %v409
        %v495 = vpop.permute.xlu0 %494
        %497 = vset.pattern.permute.xlu0 2
        %498 = vperm.xlu0 %497, %v410
        %v499 = vpop.permute.xlu0 %498
        %v501 = vlaneseq
        %v502 = vshrl.u32 %v501, 7
        %v503 = vsub.s32 0, %v502
        %v504 = vrot.slane %v484, %v503
        %v505 = vmul.f32 %v487, %v504
        %v506 = vmul.f32 %v491, %v504
        %v507 = vmul.f32 %v495, %v504
        %v508 = vmul.f32 %v499, %v504
        %v509 = vadd.f32 %v473, %v505
        %v510 = vadd.f32 %v474, %v506
        %v511 = vadd.f32 %v475, %v507
        %v512 = vadd.f32 %v476, %v508
        %v513 = vld [vmem:[%s344] sm:$0xff]
        %v514 = vld [vmem:[%s344 + $0x8] sm:$0xff]
        %v515 = vld [vmem:[%s344 + $0x10] sm:$0xff]
        %v516 = vld [vmem:[%s344 + $0x18] sm:$0xff]
        %518 = vset.pattern.permute.xlu0 0
        %519 = vperm.xlu0 %518, %v513
        %v520 = vpop.permute.xlu0 %519
        %523 = vset.pattern.permute.xlu0 0
        %524 = vperm.xlu0 %523, %v514
        %v525 = vpop.permute.xlu0 %524
        %528 = vset.pattern.permute.xlu0 0
        %529 = vperm.xlu0 %528, %v515
        %v530 = vpop.permute.xlu0 %529
        %533 = vset.pattern.permute.xlu0 0
        %534 = vperm.xlu0 %533, %v516
        %v535 = vpop.permute.xlu0 %534
        %v537 = vmul.f32 %v520, %v509
        %v538 = vmul.f32 %v525, %v510
        %v539 = vmul.f32 %v530, %v511
        %v540 = vmul.f32 %v535, %v512
        %541 = vset.pattern.permute.xlu0 1
        %542 = vperm.xlu0 %541, %v513
        %v543 = vpop.permute.xlu0 %542
        %545 = vset.pattern.permute.xlu0 1
        %546 = vperm.xlu0 %545, %v514
        %v547 = vpop.permute.xlu0 %546
        %549 = vset.pattern.permute.xlu0 1
        %550 = vperm.xlu0 %549, %v515
        %v551 = vpop.permute.xlu0 %550
        %553 = vset.pattern.permute.xlu0 1
        %554 = vperm.xlu0 %553, %v516
        %v555 = vpop.permute.xlu0 %554
        %v557 = vadd.f32 %v537, %v543
        %v558 = vadd.f32 %v538, %v547
        %v559 = vadd.f32 %v539, %v551
        %v560 = vadd.f32 %v540, %v555
        %v561 = vld [vmem:[#allocation7] sm:$0xff]
        %v562 = vld [vmem:[#allocation7 + $0x8] sm:$0xff]
        %v563 = vld [vmem:[#allocation7 + $0x10] sm:$0xff]
        %v564 = vld [vmem:[#allocation7 + $0x18] sm:$0xff]
        %vm565 = vcmp.ge.f32.partialorder %v557, 0.0
        %vm566 = vcmp.ge.f32.partialorder %v558, 0.0
        %vm567 = vcmp.ge.f32.partialorder %v559, 0.0
        %vm568 = vcmp.ge.f32.partialorder %v560, 0.0
        %570 = vrot.lane.b32.xlu0 %v561, 126
        %v571 = vpop.permute.xlu0 %570
        %s572 = vtos %v571
        %v573 = vstv %s572
        %v575 = vmul.f32 %v573, %v557
        %v576 = vmul.f32 %v573, %v558
        %v577 = vmul.f32 %v573, %v559
        %v578 = vmul.f32 %v573, %v560
        %v579 = vsel %vm565, %v557, %v575
        %v580 = vsel %vm566, %v558, %v576
        %v581 = vsel %vm567, %v559, %v577
        %v582 = vsel %vm568, %v560, %v578
        %v583 = vmul.f32 %v579, %v405
        %v584 = vmul.f32 %v580, %v405
        %v585 = vmul.f32 %v581, %v405
        %v586 = vmul.f32 %v582, %v405
        %v587 = vadd.f32 %v583, %v584
        %v588 = vadd.f32 %v587, %v585
        %v589 = vadd.f32 %v588, %v586
        %590 = vadd.xlane.f32.xlu0 %v589
        %v591 = vpop.xlane.xlu0 %590
        %v592 = vrot.slane %v591, 4
        %v593 = vadd.f32 %v591, %v592
        %v594 = vrot.slane %v593, 2
        %v595 = vadd.f32 %v593, %v594
        %v596 = vrot.slane %v595, 1
        %v597 = vadd.f32 %v595, %v596
        %s598 = vtos %v597
        %s599 = smul.f32 %s598, 0.001953125
        %v600 = vstv %s599
        %v601 = vsub.f32 %v579, %v600
        %v602 = vsub.f32 %v580, %v600
        %v603 = vsub.f32 %v581, %v600
        %v604 = vsub.f32 %v582, %v600
        %v605 = vmul.f32 %v601, %v405
        %v606 = vmul.f32 %v602, %v405
        %v607 = vmul.f32 %v603, %v405
        %v608 = vmul.f32 %v604, %v405
        %v609 = vmul.f32 %v605, %v605
        %v610 = vmul.f32 %v606, %v606
        %v611 = vmul.f32 %v607, %v607
        %v612 = vmul.f32 %v608, %v608
        %v613 = vadd.f32 %v609, %v610
        %v614 = vadd.f32 %v613, %v611
        %v615 = vadd.f32 %v614, %v612
        %616 = vadd.xlane.f32.xlu0 %v615
        %v617 = vpop.xlane.xlu0 %616
        %v618 = vrot.slane %v617, 4
        %v619 = vadd.f32 %v617, %v618
        %v620 = vrot.slane %v619, 2
        %v621 = vadd.f32 %v619, %v620
        %v622 = vrot.slane %v621, 1
        %v623 = vadd.f32 %v621, %v622
        %s624 = vtos %v623
        %s625 = smul.f32 %s624, 0.001953125
        %s626 = sadd.f32 %s625, 1e-08
        %v627 = vstv %s626
        %v628 = vrsqrt.pop %v627
        %s629 = vtos %v628
        %v630 = vstv %s629
        %v631 = vmul.f32 %v601, %v630
        %v632 = vmul.f32 %v602, %v630
        %v633 = vmul.f32 %v603, %v630
        %v634 = vmul.f32 %v604, %v630
        %635 = vset.pattern.permute.xlu0 0
        %636 = vperm.xlu0 %635, %v561
        %v637 = vpop.permute.xlu0 %636
        %640 = vset.pattern.permute.xlu0 0
        %641 = vperm.xlu0 %640, %v562
        %v642 = vpop.permute.xlu0 %641
        %645 = vset.pattern.permute.xlu0 0
        %646 = vperm.xlu0 %645, %v563
        %v647 = vpop.permute.xlu0 %646
        %650 = vset.pattern.permute.xlu0 0
        %651 = vperm.xlu0 %650, %v564
        %v652 = vpop.permute.xlu0 %651
        %v654 = vmul.f32 %v637, %v631
        %v655 = vmul.f32 %v642, %v632
        %v656 = vmul.f32 %v647, %v633
        %v657 = vmul.f32 %v652, %v634
        %658 = vset.pattern.permute.xlu0 1
        %659 = vperm.xlu0 %658, %v561
        %v660 = vpop.permute.xlu0 %659
        %662 = vset.pattern.permute.xlu0 1
        %663 = vperm.xlu0 %662, %v562
        %v664 = vpop.permute.xlu0 %663
        %666 = vset.pattern.permute.xlu0 1
        %667 = vperm.xlu0 %666, %v563
        %v668 = vpop.permute.xlu0 %667
        %670 = vset.pattern.permute.xlu0 1
        %671 = vperm.xlu0 %670, %v564
        %v672 = vpop.permute.xlu0 %671
        %v674 = vadd.f32 %v654, %v660
        %v675 = vadd.f32 %v655, %v664
        %v676 = vadd.f32 %v656, %v668
        %v677 = vadd.f32 %v657, %v672
        %v678 = vmul.f32 %v674, %v405
        %v679 = vmul.f32 %v675, %v405
        %v680 = vmul.f32 %v676, %v405
        %v681 = vmul.f32 %v677, %v405
        %v682 = vld [vmem:[#allocation8] sm:$0xff]
        %v683 = vpack.c.bf16 %v682, %v682
        %v684 = vpack.c.bf16 %v679, %v678
        %v685 = vpack.c.bf16 %v681, %v680
        %687 = vset.pattern.permute.xlu0 32
        %688 = vperm.xlu0 %687, %v682
        %v689 = vpop.permute.xlu0 %688
        %vm691 = vcmask 261120
        %v693 = vsel %vm691, %v683, 0
        %695 = vmatprep.subr.bf16.mxu0 0
        %696 = vmatpush1.bf16.msra.mxu0 %v684
        %697 = vmatprep.subr.bf16.mxu0 0
        %698 = vmatpush1.bf16.msra.mxu0 %v685
        %699 = vmatprep.subr.bf16.mxu0 0
        %700 = vmatpush1.bf16.msra.mxu0 0
        %701 = vmatprep.subr.bf16.mxu0 0
        %702 = vmatpush1.bf16.msra.mxu0 0
        %703 = vmatprep.subr.bf16.mxu0 0
        %704 = vmatpush1.bf16.msra.mxu0 0
        %705 = vmatprep.subr.bf16.mxu0 0
        %706 = vmatpush1.bf16.msra.mxu0 0
        %707 = vmatprep.subr.bf16.mxu0 0
        %708 = vmatpush1.bf16.msra.mxu0 0
        %709 = vmatprep.subr.bf16.mxu0 0
        %710 = vmatpush1.bf16.msra.mxu0 0
        %711 = vmatprep.subr.bf16.mxu0 0
        %712 = vmatpush1.bf16.msra.mxu0 0
        %713 = vmatprep.subr.bf16.mxu0 0
        %714 = vmatpush1.bf16.msra.mxu0 0
        %715 = vmatprep.subr.bf16.mxu0 0
        %716 = vmatpush1.bf16.msra.mxu0 0
        %717 = vmatprep.subr.bf16.mxu0 0
        %718 = vmatpush1.bf16.msra.mxu0 0
        %719 = vmatprep.subr.bf16.mxu0 0
        %720 = vmatpush1.bf16.msra.mxu0 0
        %721 = vmatprep.subr.bf16.mxu0 0
        %722 = vmatpush1.bf16.msra.mxu0 0
        %723 = vmatprep.subr.bf16.mxu0 0
        %724 = vmatpush1.bf16.msra.mxu0 0
        %725 = vmatprep.subr.bf16.mxu0 0
        %726 = vmatpush1.bf16.msra.mxu0 0
        %727 = vmatprep.mubr.bf16.mxu0 0
        %728 = vmatmul.mubr.bf16.gmra.mrb[0].mxu0 %v693
        %v729 = vpop.f32.mrb[0].mxu0
        %v730 = vadd.f32 %v689, %v729
        %v731 = vpop.f32.mrb[0].mxu0
        %v732 = vpop.f32.mrb[0].mxu0
        %v733 = vpop.f32.mrb[0].mxu0
        %734 = vdwg.mxu0
        %735 = vst [vmem:[%s399] sm:$0xff] %v730
        %v736 = vld [vmem:[#allocation11] sm:$0xf]
        %v737 = vld [vmem:[#allocation11 + $0x4] sm:$0xf]
        %v738 = vld [vmem:[#allocation11 + $0x8] sm:$0xf]
        %v739 = vld [vmem:[#allocation11 + $0xc] sm:$0xf]
        %740 = vrot.lane.b32.xlu0 %v678, 2
        %v741 = vpop.permute.xlu0 %740
        %742 = vrot.lane.b32.xlu0 %v679, 2
        %v743 = vpop.permute.xlu0 %742
        %744 = vrot.lane.b32.xlu0 %v680, 2
        %v745 = vpop.permute.xlu0 %744
        %746 = vrot.lane.b32.xlu0 %v681, 2
        %v747 = vpop.permute.xlu0 %746
        %vm748 = vcmp.ge.s32.totalorder %v402, 2
        %vm749 = vmand %vm748, %vm414
        %v750 = vsel %vm749, 1, 0
        %v751 = vcvt.s32.f32 %v750
        %v752 = vmul.f32 %v741, %v751
        %v753 = vmul.f32 %v743, %v751
        %v754 = vmul.f32 %v745, %v751
        %v755 = vmul.f32 %v747, %v751
        %v756 = vpack.c.bf16 %v753, %v752
        %v757 = vpack.c.bf16 %v755, %v754
        %v762 = vunpack.c.l.b16 %v736
        %v763 = vunpack.c.l.b16 %v737
        %v764 = vunpack.c.l.b16 %v738
        %v765 = vunpack.c.l.b16 %v739
        %v766 = vpack.c.b16 %v763, %v762
        %v767 = vpack.c.b16 %v765, %v764
        %768 = vrot.lane.b32.xlu0 %v766, 96
        %v769 = vpop.permute.xlu0 %768
        %770 = vrot.lane.b32.xlu0 %v767, 96
        %v771 = vpop.permute.xlu0 %770
        %v773 = vsel %vm691, %v769, 0
        %v776 = vsel %vm691, %v771, 0
        %778 = vmatprep.subr.bf16.mxu0 0
        %779 = vmatpush1.bf16.msra.mxu0 %v684
        %780 = vmatprep.subr.bf16.mxu0 0
        %781 = vmatpush1.bf16.msra.mxu0 %v685
        %782 = vmatprep.subr.bf16.mxu0 0
        %783 = vmatpush1.bf16.msra.mxu0 0
        %784 = vmatprep.subr.bf16.mxu0 0
        %785 = vmatpush1.bf16.msra.mxu0 0
        %786 = vmatprep.subr.bf16.mxu0 0
        %787 = vmatpush1.bf16.msra.mxu0 0
        %788 = vmatprep.subr.bf16.mxu0 0
        %789 = vmatpush1.bf16.msra.mxu0 0
        %790 = vmatprep.subr.bf16.mxu0 0
        %791 = vmatpush1.bf16.msra.mxu0 0
        %792 = vmatprep.subr.bf16.mxu0 0
        %793 = vmatpush1.bf16.msra.mxu0 0
        %794 = vmatprep.subr.bf16.mxu0 0
        %795 = vmatpush1.bf16.msra.mxu0 0
        %796 = vmatprep.subr.bf16.mxu0 0
        %797 = vmatpush1.bf16.msra.mxu0 0
        %798 = vmatprep.subr.bf16.mxu0 0
        %799 = vmatpush1.bf16.msra.mxu0 0
        %800 = vmatprep.subr.bf16.mxu0 0
        %801 = vmatpush1.bf16.msra.mxu0 0
        %802 = vmatprep.subr.bf16.mxu0 0
        %803 = vmatpush1.bf16.msra.mxu0 0
        %804 = vmatprep.subr.bf16.mxu0 0
        %805 = vmatpush1.bf16.msra.mxu0 0
        %806 = vmatprep.subr.bf16.mxu0 0
        %807 = vmatpush1.bf16.msra.mxu0 0
        %808 = vmatprep.subr.bf16.mxu0 0
        %809 = vmatpush1.bf16.msra.mxu0 0
        %810 = vmatprep.mubr.bf16.mxu0 0
        %811 = vmatmul.mubr.bf16.gmra.mrb[0].mxu0 %v773
        %v812 = vpop.f32.mrb[0].mxu0
        %v813 = vadd.f32 0.0, %v812
        %v814 = vpop.f32.mrb[0].mxu0
        %v815 = vpop.f32.mrb[0].mxu0
        %v816 = vadd.f32 0.0, %v815
        %v817 = vpop.f32.mrb[0].mxu0
        %818 = vmatprep.mubr.bf16.mxu0 0
        %819 = vmatmul.mubr.bf16.gmra.mrb[0].mxu0 %v776
        %v820 = vpop.f32.mrb[0].mxu0
        %v821 = vadd.f32 0.0, %v820
        %v822 = vpop.f32.mrb[0].mxu0
        %v823 = vpop.f32.mrb[0].mxu0
        %v824 = vadd.f32 0.0, %v823
        %v825 = vpop.f32.mrb[0].mxu0
        %826 = vdwg.mxu0
        %v828 = vsel %vm691, %v766, 0
        %v831 = vsel %vm691, %v767, 0
        %833 = vmatprep.subr.bf16.mxu0 0
        %834 = vmatpush1.bf16.msra.mxu0 %v756
        %835 = vmatprep.subr.bf16.mxu0 0
        %836 = vmatpush1.bf16.msra.mxu0 %v757
        %837 = vmatprep.subr.bf16.mxu0 0
        %838 = vmatpush1.bf16.msra.mxu0 0
        %839 = vmatprep.subr.bf16.mxu0 0
        %840 = vmatpush1.bf16.msra.mxu0 0
        %841 = vmatprep.subr.bf16.mxu0 0
        %842 = vmatpush1.bf16.msra.mxu0 0
        %843 = vmatprep.subr.bf16.mxu0 0
        %844 = vmatpush1.bf16.msra.mxu0 0
        %845 = vmatprep.subr.bf16.mxu0 0
        %846 = vmatpush1.bf16.msra.mxu0 0
        %847 = vmatprep.subr.bf16.mxu0 0
        %848 = vmatpush1.bf16.msra.mxu0 0
        %849 = vmatprep.subr.bf16.mxu0 0
        %850 = vmatpush1.bf16.msra.mxu0 0
        %851 = vmatprep.subr.bf16.mxu0 0
        %852 = vmatpush1.bf16.msra.mxu0 0
        %853 = vmatprep.subr.bf16.mxu0 0
        %854 = vmatpush1.bf16.msra.mxu0 0
        %855 = vmatprep.subr.bf16.mxu0 0
        %856 = vmatpush1.bf16.msra.mxu0 0
        %857 = vmatprep.subr.bf16.mxu0 0
        %858 = vmatpush1.bf16.msra.mxu0 0
        %859 = vmatprep.subr.bf16.mxu0 0
        %860 = vmatpush1.bf16.msra.mxu0 0
        %861 = vmatprep.subr.bf16.mxu0 0
        %862 = vmatpush1.bf16.msra.mxu0 0
        %863 = vmatprep.subr.bf16.mxu0 0
        %864 = vmatpush1.bf16.msra.mxu0 0
        %865 = vmatprep.mubr.bf16.mxu0 0
        %866 = vmatmul.mubr.bf16.gmra.mrb[0].mxu0 %v828
        %v867 = vpop.f32.mrb[0].mxu0
        %v868 = vadd.f32 %v813, %v867
        %v869 = vpop.f32.mrb[0].mxu0
        %v870 = vpop.f32.mrb[0].mxu0
        %v871 = vadd.f32 %v816, %v870
        %v872 = vpop.f32.mrb[0].mxu0
        %873 = vmatprep.mubr.bf16.mxu0 0
        %874 = vmatmul.mubr.bf16.gmra.mrb[0].mxu0 %v831
        %v875 = vpop.f32.mrb[0].mxu0
        %v876 = vadd.f32 %v821, %v875
        %v877 = vpop.f32.mrb[0].mxu0
        %v878 = vpop.f32.mrb[0].mxu0
        %v879 = vadd.f32 %v824, %v878
        %v880 = vpop.f32.mrb[0].mxu0
        %881 = vdwg.mxu0
        %882 = vrot.lane.b32.xlu0 %v678, 126
        %v883 = vpop.permute.xlu0 %882
        %884 = vrot.lane.b32.xlu0 %v679, 126
        %v885 = vpop.permute.xlu0 %884
        %886 = vrot.lane.b32.xlu0 %v680, 126
        %v887 = vpop.permute.xlu0 %886
        %888 = vrot.lane.b32.xlu0 %v681, 126
        %v889 = vpop.permute.xlu0 %888
        %vm890 = vcmp.lt.s32.totalorder %v402, 126
        %vm891 = vmand %vm479, %vm890
        %v892 = vsel %vm891, 1, 0
        %v893 = vcvt.s32.f32 %v892
        %v894 = vmul.f32 %v883, %v893
        %v895 = vmul.f32 %v885, %v893
        %v896 = vmul.f32 %v887, %v893
        %v897 = vmul.f32 %v889, %v893
        %v898 = vpack.c.bf16 %v895, %v894
        %v899 = vpack.c.bf16 %v897, %v896
        %900 = vrot.lane.b32.xlu0 %v766, 64
        %v901 = vpop.permute.xlu0 %900
        %902 = vrot.lane.b32.xlu0 %v767, 64
        %v903 = vpop.permute.xlu0 %902
        %v905 = vsel %vm691, %v901, 0
        %v908 = vsel %vm691, %v903, 0
        %910 = vmatprep.subr.bf16.mxu0 0
        %911 = vmatpush1.bf16.msra.mxu0 %v898
        %912 = vmatprep.subr.bf16.mxu0 0
        %913 = vmatpush1.bf16.msra.mxu0 %v899
        %914 = vmatprep.subr.bf16.mxu0 0
        %915 = vmatpush1.bf16.msra.mxu0 0
        %916 = vmatprep.subr.bf16.mxu0 0
        %917 = vmatpush1.bf16.msra.mxu0 0
        %918 = vmatprep.subr.bf16.mxu0 0
        %919 = vmatpush1.bf16.msra.mxu0 0
        %920 = vmatprep.subr.bf16.mxu0 0
        %921 = vmatpush1.bf16.msra.mxu0 0
        %922 = vmatprep.subr.bf16.mxu0 0
        %923 = vmatpush1.bf16.msra.mxu0 0
        %924 = vmatprep.subr.bf16.mxu0 0
        %925 = vmatpush1.bf16.msra.mxu0 0
        %926 = vmatprep.subr.bf16.mxu0 0
        %927 = vmatpush1.bf16.msra.mxu0 0
        %928 = vmatprep.subr.bf16.mxu0 0
        %929 = vmatpush1.bf16.msra.mxu0 0
        %930 = vmatprep.subr.bf16.mxu0 0
        %931 = vmatpush1.bf16.msra.mxu0 0
        %932 = vmatprep.subr.bf16.mxu0 0
        %933 = vmatpush1.bf16.msra.mxu0 0
        %934 = vmatprep.subr.bf16.mxu0 0
        %935 = vmatpush1.bf16.msra.mxu0 0
        %936 = vmatprep.subr.bf16.mxu0 0
        %937 = vmatpush1.bf16.msra.mxu0 0
        %938 = vmatprep.subr.bf16.mxu0 0
        %939 = vmatpush1.bf16.msra.mxu0 0
        %940 = vmatprep.subr.bf16.mxu0 0
        %941 = vmatpush1.bf16.msra.mxu0 0
        %942 = vmatprep.mubr.bf16.mxu0 0
        %943 = vmatmul.mubr.bf16.gmra.mrb[0].mxu0 %v905
        %v944 = vpop.f32.mrb[0].mxu0
        %v945 = vadd.f32 0.0, %v944
        %v946 = vpop.f32.mrb[0].mxu0
        %v947 = vpop.f32.mrb[0].mxu0
        %v948 = vadd.f32 0.0, %v947
        %v949 = vpop.f32.mrb[0].mxu0
        %950 = vmatprep.mubr.bf16.mxu0 0
        %951 = vmatmul.mubr.bf16.gmra.mrb[0].mxu0 %v908
        %v952 = vpop.f32.mrb[0].mxu0
        %v953 = vadd.f32 0.0, %v952
        %v954 = vpop.f32.mrb[0].mxu0
        %v955 = vpop.f32.mrb[0].mxu0
        %v956 = vadd.f32 0.0, %v955
        %v957 = vpop.f32.mrb[0].mxu0
        %958 = vdwg.mxu0
        %v959 = vadd.f32 %v868, %v945
        %v960 = vadd.f32 %v871, %v948
        %v961 = vadd.f32 %v876, %v953
        %v962 = vadd.f32 %v879, %v956
        %s963 = scalar_lea.vmem %s344, 32 [#allocation5]
        %v964 = vld [vmem:[%s963] sm:$0xff]
        %v965 = vld [vmem:[%s963 + $0x8] sm:$0xff]
        %v966 = vld [vmem:[%s963 + $0x10] sm:$0xff]
        %v967 = vld [vmem:[%s963 + $0x18] sm:$0xff]
        %969 = vset.pattern.permute.xlu0 0
        %970 = vperm.xlu0 %969, %v964
        %v971 = vpop.permute.xlu0 %970
        %974 = vset.pattern.permute.xlu0 0
        %975 = vperm.xlu0 %974, %v965
        %v976 = vpop.permute.xlu0 %975
        %979 = vset.pattern.permute.xlu0 0
        %980 = vperm.xlu0 %979, %v966
        %v981 = vpop.permute.xlu0 %980
        %984 = vset.pattern.permute.xlu0 0
        %985 = vperm.xlu0 %984, %v967
        %v986 = vpop.permute.xlu0 %985
        %v988 = vmul.f32 %v971, %v959
        %v989 = vmul.f32 %v976, %v960
        %v990 = vmul.f32 %v981, %v961
        %v991 = vmul.f32 %v986, %v962
        %992 = vset.pattern.permute.xlu0 1
        %993 = vperm.xlu0 %992, %v964
        %v994 = vpop.permute.xlu0 %993
        %996 = vset.pattern.permute.xlu0 1
        %997 = vperm.xlu0 %996, %v965
        %v998 = vpop.permute.xlu0 %997
        %1000 = vset.pattern.permute.xlu0 1
        %1001 = vperm.xlu0 %1000, %v966
        %v1002 = vpop.permute.xlu0 %1001
        %1004 = vset.pattern.permute.xlu0 1
        %1005 = vperm.xlu0 %1004, %v967
        %v1006 = vpop.permute.xlu0 %1005
        %v1008 = vadd.f32 %v988, %v994
        %v1009 = vadd.f32 %v989, %v998
        %v1010 = vadd.f32 %v990, %v1002
        %v1011 = vadd.f32 %v991, %v1006
        %s1012 = scalar_lea.vmem [#allocation7], 32
        %v1013 = vld [vmem:[%s1012] sm:$0xff]
        %v1014 = vld [vmem:[%s1012 + $0x8] sm:$0xff]
        %v1015 = vld [vmem:[%s1012 + $0x10] sm:$0xff]
        %v1016 = vld [vmem:[%s1012 + $0x18] sm:$0xff]
        %vm1017 = vcmp.ge.f32.partialorder %v1008, 0.0
        %vm1018 = vcmp.ge.f32.partialorder %v1009, 0.0
        %vm1019 = vcmp.ge.f32.partialorder %v1010, 0.0
        %vm1020 = vcmp.ge.f32.partialorder %v1011, 0.0
        %1022 = vrot.lane.b32.xlu0 %v1013, 126
        %v1023 = vpop.permute.xlu0 %1022
        %s1024 = vtos %v1023
        %v1025 = vstv %s1024
        %v1027 = vmul.f32 %v1025, %v1008
        %v1028 = vmul.f32 %v1025, %v1009
        %v1029 = vmul.f32 %v1025, %v1010
        %v1030 = vmul.f32 %v1025, %v1011
        %v1031 = vsel %vm1017, %v1008, %v1027
        %v1032 = vsel %vm1018, %v1009, %v1028
        %v1033 = vsel %vm1019, %v1010, %v1029
        %v1034 = vsel %vm1020, %v1011, %v1030
        %v1035 = vmul.f32 %v1031, %v405
        %v1036 = vmul.f32 %v1032, %v405
        %v1037 = vmul.f32 %v1033, %v405
        %v1038 = vmul.f32 %v1034, %v405
        %v1039 = vadd.f32 %v1035, %v1036
        %v1040 = vadd.f32 %v1039, %v1037
        %v1041 = vadd.f32 %v1040, %v1038
        %1042 = vadd.xlane.f32.xlu0 %v1041
        %v1043 = vpop.xlane.xlu0 %1042
        %v1044 = vrot.slane %v1043, 4
        %v1045 = vadd.f32 %v1043, %v1044
        %v1046 = vrot.slane %v1045, 2
        %v1047 = vadd.f32 %v1045, %v1046
        %v1048 = vrot.slane %v1047, 1
        %v1049 = vadd.f32 %v1047, %v1048
        %s1050 = vtos %v1049
        %s1051 = smul.f32 %s1050, 0.001953125
        %v1052 = vstv %s1051
        %v1053 = vsub.f32 %v1031, %v1052
        %v1054 = vsub.f32 %v1032, %v1052
        %v1055 = vsub.f32 %v1033, %v1052
        %v1056 = vsub.f32 %v1034, %v1052
        %v1057 = vmul.f32 %v1053, %v405
        %v1058 = vmul.f32 %v1054, %v405
        %v1059 = vmul.f32 %v1055, %v405
        %v1060 = vmul.f32 %v1056, %v405
        %v1061 = vmul.f32 %v1057, %v1057
        %v1062 = vmul.f32 %v1058, %v1058
        %v1063 = vmul.f32 %v1059, %v1059
        %v1064 = vmul.f32 %v1060, %v1060
        %v1065 = vadd.f32 %v1061, %v1062
        %v1066 = vadd.f32 %v1065, %v1063
        %v1067 = vadd.f32 %v1066, %v1064
        %1068 = vadd.xlane.f32.xlu0 %v1067
        %v1069 = vpop.xlane.xlu0 %1068
        %v1070 = vrot.slane %v1069, 4
        %v1071 = vadd.f32 %v1069, %v1070
        %v1072 = vrot.slane %v1071, 2
        %v1073 = vadd.f32 %v1071, %v1072
        %v1074 = vrot.slane %v1073, 1
        %v1075 = vadd.f32 %v1073, %v1074
        %s1076 = vtos %v1075
        %s1077 = smul.f32 %s1076, 0.001953125
        %s1078 = sadd.f32 %s1077, 1e-08
        %v1079 = vstv %s1078
        %v1080 = vrsqrt.pop %v1079
        %s1081 = vtos %v1080
        %v1082 = vstv %s1081
        %v1083 = vmul.f32 %v1053, %v1082
        %v1084 = vmul.f32 %v1054, %v1082
        %v1085 = vmul.f32 %v1055, %v1082
        %v1086 = vmul.f32 %v1056, %v1082
        %1087 = vset.pattern.permute.xlu0 0
        %1088 = vperm.xlu0 %1087, %v1013
        %v1089 = vpop.permute.xlu0 %1088
        %1092 = vset.pattern.permute.xlu0 0
        %1093 = vperm.xlu0 %1092, %v1014
        %v1094 = vpop.permute.xlu0 %1093
        %1097 = vset.pattern.permute.xlu0 0
        %1098 = vperm.xlu0 %1097, %v1015
        %v1099 = vpop.permute.xlu0 %1098
        %1102 = vset.pattern.permute.xlu0 0
        %1103 = vperm.xlu0 %1102, %v1016
        %v1104 = vpop.permute.xlu0 %1103
        %v1106 = vmul.f32 %v1089, %v1083
        %v1107 = vmul.f32 %v1094, %v1084
        %v1108 = vmul.f32 %v1099, %v1085
        %v1109 = vmul.f32 %v1104, %v1086
        %1110 = vset.pattern.permute.xlu0 1
        %1111 = vperm.xlu0 %1110, %v1013
        %v1112 = vpop.permute.xlu0 %1111
        %1114 = vset.pattern.permute.xlu0 1
        %1115 = vperm.xlu0 %1114, %v1014
        %v1116 = vpop.permute.xlu0 %1115
        %1118 = vset.pattern.permute.xlu0 1
        %1119 = vperm.xlu0 %1118, %v1015
        %v1120 = vpop.permute.xlu0 %1119
        %1122 = vset.pattern.permute.xlu0 1
        %1123 = vperm.xlu0 %1122, %v1016
        %v1124 = vpop.permute.xlu0 %1123
        %v1126 = vadd.f32 %v1106, %v1112
        %v1127 = vadd.f32 %v1107, %v1116
        %v1128 = vadd.f32 %v1108, %v1120
        %v1129 = vadd.f32 %v1109, %v1124
        %v1130 = vadd.f32 %v678, %v1126
        %v1131 = vadd.f32 %v679, %v1127
        %v1132 = vadd.f32 %v680, %v1128
        %v1133 = vadd.f32 %v681, %v1129
        %v1134 = vmul.f32 %v1130, %v405
        %v1135 = vmul.f32 %v1131, %v405
        %v1136 = vmul.f32 %v1132, %v405
        %v1137 = vmul.f32 %v1133, %v405
        %s1138 = scalar_lea.vmem [#allocation8], 8
        %v1139 = vld [vmem:[%s1138] sm:$0xff]
        %v1140 = vpack.c.bf16 %v1139, %v1139
        %v1141 = vpack.c.bf16 %v1135, %v1134
        %v1142 = vpack.c.bf16 %v1137, %v1136
        %1144 = vset.pattern.permute.xlu0 32
        %1145 = vperm.xlu0 %1144, %v1139
        %v1146 = vpop.permute.xlu0 %1145
        %v1149 = vsel %vm691, %v1140, 0
        %1151 = vmatprep.subr.bf16.mxu0 0
        %1152 = vmatpush1.bf16.msra.mxu0 %v1141
        %1153 = vmatprep.subr.bf16.mxu0 0
        %1154 = vmatpush1.bf16.msra.mxu0 %v1142
        %1155 = vmatprep.subr.bf16.mxu0 0
        %1156 = vmatpush1.bf16.msra.mxu0 0
        %1157 = vmatprep.subr.bf16.mxu0 0
        %1158 = vmatpush1.bf16.msra.mxu0 0
        %1159 = vmatprep.subr.bf16.mxu0 0
        %1160 = vmatpush1.bf16.msra.mxu0 0
        %1161 = vmatprep.subr.bf16.mxu0 0
        %1162 = vmatpush1.bf16.msra.mxu0 0
        %1163 = vmatprep.subr.bf16.mxu0 0
        %1164 = vmatpush1.bf16.msra.mxu0 0
        %1165 = vmatprep.subr.bf16.mxu0 0
        %1166 = vmatpush1.bf16.msra.mxu0 0
        %1167 = vmatprep.subr.bf16.mxu0 0
        %1168 = vmatpush1.bf16.msra.mxu0 0
        %1169 = vmatprep.subr.bf16.mxu0 0
        %1170 = vmatpush1.bf16.msra.mxu0 0
        %1171 = vmatprep.subr.bf16.mxu0 0
        %1172 = vmatpush1.bf16.msra.mxu0 0
        %1173 = vmatprep.subr.bf16.mxu0 0
        %1174 = vmatpush1.bf16.msra.mxu0 0
        %1175 = vmatprep.subr.bf16.mxu0 0
        %1176 = vmatpush1.bf16.msra.mxu0 0
        %1177 = vmatprep.subr.bf16.mxu0 0
        %1178 = vmatpush1.bf16.msra.mxu0 0
        %1179 = vmatprep.subr.bf16.mxu0 0
        %1180 = vmatpush1.bf16.msra.mxu0 0
        %1181 = vmatprep.subr.bf16.mxu0 0
        %1182 = vmatpush1.bf16.msra.mxu0 0
        %1183 = vmatprep.mubr.bf16.mxu0 0
        %1184 = vmatmul.mubr.bf16.gmra.mrb[0].mxu0 %v1149
        %v1185 = vpop.f32.mrb[0].mxu0
        %v1186 = vadd.f32 %v1146, %v1185
        %v1187 = vpop.f32.mrb[0].mxu0
        %v1188 = vpop.f32.mrb[0].mxu0
        %v1189 = vpop.f32.mrb[0].mxu0
        %1190 = vdwg.mxu0
        %s1191 = scalar_lea.vmem %s399, 8 [#allocation14]
        %1192 = vst [vmem:[%s1191] sm:$0xff] %v1186
        %1193 = vst [vmem:[%s392] sm:$0xff] %v1134
        %1194 = vst [vmem:[%s392 + $0x8] sm:$0xff] %v1135
        %1195 = vst [vmem:[%s392 + $0x10] sm:$0xff] %v1136
        %1196 = vst [vmem:[%s392 + $0x18] sm:$0xff] %v1137
        %s1197 = sand.u32 %s177, 1
        %s1198 = scalar_lea.sflag [#allocation4], %s1197
        %s1199 = sand.u32 %s177, 1
        %s1200 = smul.addr %s1199, 32
        %s1201 = scalar_lea.vmem [#allocation13], %s1200
        %s1202 = sand.u32 %s203, 1
        %s1203 = scalar_lea.sflag [#allocation15], %s1202
        %s1204 = sand.u32 %s203, 1
        %s1205 = smul.addr %s1204, 16
        %s1206 = scalar_lea.vmem [#allocation14], %s1205
        // Predicated region
        $region69: #{tpu_custom_call.1} parent=43 // pred_check
          %p1207 = pneg %p187
        $region70: #{tpu_custom_call.1} parent=43 // pred_check_branch
          %1209 = sbr.rel (%p1207) target = $region72
        $region71: #{tpu_custom_call.1} parent=43 // pred_region
          %s1211 = ssub.s32 512, 512
          %1212 = vsyncadd %s1198, %s1211
          %s1213 = smul.addr %s33, 4
          %s1214 = smul.addr %s1213, 128
          %s1215 = scalar_lea.hbm %s6, %s1214
          %s1216 = sshll.u32 %s1201, 4
          %s1217 = int_to_ptr.vmem [resolvable:$true] %s1216
          %1222 = dma.vmem_to_hbm [thread:$0]  %s1217, 512, %s1215, %s1198, 128, 128, 8
        $region72: #{tpu_custom_call.1} parent=43 // pred_fallthru
          _
        // Predicated region
        $region73: #{tpu_custom_call.1} parent=43 // pred_check
          %p1223 = pneg %p213
        $region74: #{tpu_custom_call.1} parent=43 // pred_check_branch
          %1225 = sbr.rel (%p1223) target = $region76
        $region75: #{tpu_custom_call.1} parent=43 // pred_region
          %s1227 = ssub.s32 256, 256
          %1228 = vsyncadd %s1203, %s1227
          %s1229 = smul.addr %s33, 2
          %s1230 = smul.addr %s1229, 128
          %s1231 = scalar_lea.hbm %s7, %s1230
          %s1232 = sshll.u32 %s1206, 4
          %s1233 = int_to_ptr.vmem [resolvable:$true] %s1232
          %1238 = dma.vmem_to_hbm [thread:$0]  %s1233, 256, %s1231, %s1203, 128, 128, 8
        $region76: #{tpu_custom_call.1} parent=43 // pred_fallthru
          _
      $region44: #{tpu_custom_call.1} parent=5 // pred_fallthru
        _
      %p1239 = scmp.le.s32.totalorder 2, %s28
      // Predicated region
      $region77: #{tpu_custom_call.1} parent=5 // pred_check
        %p1240 = pneg %p1239
      $region78: #{tpu_custom_call.1} parent=5 // pred_check_branch
        %1242 = sbr.rel (%p1240) target = $region80
      $region79: #{tpu_custom_call.1} parent=5 // pred_region
        %s1243 = ssub.s32 %s28, 2
        // Predicated region
        $region81: #{tpu_custom_call.1} parent=79 // pred_check
          %p1244 = pneg %p193
        $region82: #{tpu_custom_call.1} parent=79 // pred_check_branch
          %1246 = sbr.rel (%p1244) target = $region84
        $region83: #{tpu_custom_call.1} parent=79 // pred_region
          %s1247 = sand.u32 %s178, 1
          %s1248 = scalar_lea.sflag [#allocation4], %s1247
          %s1249 = sand.u32 %s178, 1
          %s1250 = smul.addr %s1249, 32
          %s1251 = scalar_lea.vmem [#allocation13], %s1250
          %1252 = dma.done %s1248, 512
        $region84: #{tpu_custom_call.1} parent=79 // pred_fallthru
          _
        // Predicated region
        $region85: #{tpu_custom_call.1} parent=79 // pred_check
          %p1253 = pneg %p219
        $region86: #{tpu_custom_call.1} parent=79 // pred_check_branch
          %1255 = sbr.rel (%p1253) target = $region88
        $region87: #{tpu_custom_call.1} parent=79 // pred_region
          %s1256 = sand.u32 %s204, 1
          %s1257 = scalar_lea.sflag [#allocation15], %s1256
          %s1258 = sand.u32 %s204, 1
          %s1259 = smul.addr %s1258, 16
          %s1260 = scalar_lea.vmem [#allocation14], %s1259
          %1261 = dma.done %s1257, 256
        $region88: #{tpu_custom_call.1} parent=79 // pred_fallthru
          _
      $region80: #{tpu_custom_call.1} parent=5 // pred_fallthru
        _
    $region6: #{tpu_custom_call.1} parent=1 // loop_footer
      %s32 = sadd.s32 1, %s28
    $region7: #{tpu_custom_call.1} parent=1 // loop_footer_branch
      %27 = sbr.rel target = $region3
    $region8: #{tpu_custom_call.1} parent=1 // loop_exit
      _
    %1262 = vsyncpa [#allocation3], 1
    %s1263 = scalar_lea.sflag [#allocation3], 1
    %1264 = vsyncpa %s1263, 1
    %1265 = vsyncpa [#allocation6], 1
    %s1266 = scalar_lea.sflag [#allocation6], 1
    %1267 = vsyncpa %s1266, 1
    %1268 = vsyncpa [#allocation9], 1
    %1269 = vsyncpa [#allocation12], 1
    %1270 = vsyncpa [#allocation4], 1
    %s1271 = scalar_lea.sflag [#allocation4], 1
    %1272 = vsyncpa %s1271, 1
    %1273 = vsyncpa [#allocation15], 1
    %s1274 = scalar_lea.sflag [#allocation15], 1
    %1275 = vsyncpa %s1274, 1

</llo_original>
